<compile_context>
chip_gen: v6e
topology: v6e:2x2x1
jax: 0.10.0
libtpu: 0.0.40
codegen_flags: <defaults>
</compile_context>

<pallas_src>
import functools
import math

import jax
import jax.numpy as jnp
from jax.experimental import pallas as pl
from jax.experimental.pallas import tpu as pltpu

# ----------------------------- config -----------------------------
IMAGE_SIZE = 16
PATCH = 4
C_IN = 3
EMB = 32
NUM_HEADS = 8
NUM_BLOCKS = 2
MLP_HID = EMB * 4
NPATCH = (IMAGE_SIZE // PATCH) ** 2
LN_EPS = 1e-5
SLAB_LANES = 128  # both parameter slabs are padded to a lane-dense width


# --------------------------- slab layout ---------------------------
def _align8(n):
    return -(-n // 8) * 8


def make_layout(batch):
    """Static row layout of the two parameter slabs.

    Every entry starts at a sublane offset that is a multiple of 8, so the
    in-kernel static slices are cheap aligned views.
    Returns (w_table, w_rows, v_table, v_rows); table: name -> (off, rows, cols).
    """
    w_entries = [("patch_w", C_IN * PATCH * PATCH, EMB),
                 ("head_sum", EMB, NUM_HEADS),        # S  (E,H): sum head lanes
                 ("head_bcast", NUM_HEADS, EMB)]      # ST (H,E): broadcast per head
    for b in range(NUM_BLOCKS):
        w_entries += [(f"wqkv{b}", EMB, 3 * EMB),
                      (f"wout{b}", EMB, EMB),
                      (f"ff1w{b}", EMB, MLP_HID),
                      (f"ff2w{b}", MLP_HID, EMB)]

    v_entries = [("pos", batch * NPATCH, EMB), ("patch_b", 1, EMB)]
    for b in range(NUM_BLOCKS):
        v_entries += [(f"bqkv{b}", 1, 3 * EMB), (f"bo{b}", 1, EMB),
                      (f"g1_{b}", 1, EMB), (f"b1_{b}", 1, EMB),
                      (f"c1_{b}", 1, MLP_HID), (f"c2_{b}", 1, EMB),
                      (f"g2_{b}", 1, EMB), (f"b2_{b}", 1, EMB)]

    def build(entries):
        off, table = 0, {}
        for name, r, c in entries:
            off = _align8(off)
            table[name] = (off, r, c)
            off += r
        return table, _align8(off)

    w_table, w_rows = build(w_entries)
    v_table, v_rows = build(v_entries)
    return w_table, w_rows, v_table, v_rows


# --------------------------- fused Pallas kernel ---------------------------
def _layernorm(h, g, b, eps):
    mu = jnp.mean(h, axis=-1, keepdims=True)
    var = jnp.mean((h - mu) ** 2, axis=-1, keepdims=True)
    return (h - mu) * jax.lax.rsqrt(var + eps) * g + b


def _vit_fused_kernel(patches_ref, w_ref, v_ref, out_ref, *,
                      batch, npatch, emb, heads, eps, w_off, v_off):
    """Whole ViT forward on VMEM-resident data (single invocation, no grid)."""
    f32 = jnp.float32
    hd = emb // heads
    scale = 1.0 / math.sqrt(hd)

    def W(name):
        off, r, c = w_off[name]
        return w_ref[off:off + r, 0:c]

    def V(name):
        off, r, c = v_off[name]
        return v_ref[off:off + r, 0:c]

    S = W("head_sum")      # (E, H) 0/1 matrix: MXU per-head lane sum
    ST = W("head_bcast")   # (H, E) 0/1 matrix: MXU per-head lane broadcast

    # ---- patch embedding + position embedding (pos pre-tiled to B*NP rows) ----
    x = jnp.dot(patches_ref[...], W("patch_w"), preferred_element_type=f32)
    x = x + V("patch_b") + V("pos")

    # ---- transformer blocks (statically unrolled) ----
    for blk in range(NUM_BLOCKS):
        # folded (to_qkv + MHA in_proj) packed projection: one MXU push, 96 lanes
        qkv = jnp.dot(x, W(f"wqkv{blk}"), preferred_element_type=f32) + V(f"bqkv{blk}")
        qp = qkv[:, 0:emb]
        kp = qkv[:, emb:2 * emb]
        vp = qkv[:, 2 * emb:3 * emb]

        # nn.MultiheadAttention (batch_first=False) on (B, N, E): attention runs
        # ACROSS the image-batch axis (seq_len = B) independently per (patch, head).
        # Keys/values of the j-th other batch are aligned onto each row with a
        # sublane roll (XLU) -- no slices, no concatenates, no VMEM copies.
        s = []
        for j in range(batch):
            kj = kp if j == 0 else pltpu.roll(kp, shift=j * npatch, axis=0)
            s.append(jnp.dot(qp * kj, S, preferred_element_type=f32) * scale)

        m = s[0]
        for j in range(1, batch):
            m = jnp.maximum(m, s[j])
        p = [jnp.exp(si - m) for si in s]          # (B*NP, H) each
        denom = p[0]
        for j in range(1, batch):
            denom = denom + p[j]
        inv = pl.reciprocal(denom, approx=True)    # EUP slot, effectively free

        acc = None
        for j in range(batch):
            vj = vp if j == 0 else pltpu.roll(vp, shift=j * npatch, axis=0)
            contrib = jnp.dot(p[j] * inv, ST, preferred_element_type=f32) * vj
            acc = contrib if acc is None else acc + contrib

        # MHA out_proj, residual + norm1
        attn = jnp.dot(acc, W(f"wout{blk}"), preferred_element_type=f32) + V(f"bo{blk}")
        x = _layernorm(x + attn, V(f"g1_{blk}"), V(f"b1_{blk}"), eps)

        # MLP, residual + norm2
        h = jnp.dot(x, W(f"ff1w{blk}"), preferred_element_type=f32) + V(f"c1_{blk}")
        h = jnp.maximum(h, 0.0)
        h = jnp.dot(h, W(f"ff2w{blk}"), preferred_element_type=f32) + V(f"c2_{blk}")
        x = _layernorm(x + h, V(f"g2_{blk}"), V(f"b2_{blk}"), eps)

    # single (contiguous) HBM writeback of the kernel
    out_ref[...] = x.astype(out_ref.dtype)


# ----------------------- parameter prep (host side) -----------------------
def prepare_params(params, batch):
    """Fold to_qkv with the MHA in_proj and pack everything into two
    lane-dense slabs: (weights, vectors).  Runs once, host side."""
    E = EMB
    hp = jax.lax.Precision.HIGHEST  # keep the folding numerically exact-ish
    w_off, w_rows, v_off, v_rows = make_layout(batch)
    w_slab = jnp.zeros((w_rows, SLAB_LANES), jnp.float32)
    v_slab = jnp.zeros((v_rows, SLAB_LANES), jnp.float32)

    def put(slab, entry, arr):
        off, r, c = entry
        arr = jnp.asarray(arr, jnp.float32).reshape(r, c)
        return slab.at[off:off + r, 0:c].set(arr)

    # patch embedding, per-head summation/broadcast matrices, position embedding
    w_slab = put(w_slab, w_off["patch_w"], params["patch_w"])
    hd = E // NUM_HEADS
    S = (jnp.arange(E)[:, None] // hd == jnp.arange(NUM_HEADS)[None, :]).astype(jnp.float32)
    w_slab = put(w_slab, w_off["head_sum"], S)
    w_slab = put(w_slab, w_off["head_bcast"], S.T)
    v_slab = put(v_slab, v_off["patch_b"], params["patch_b"])
    pos_tiled = jnp.tile(params["pos_emb"].reshape(NPATCH, E), (batch, 1))
    v_slab = put(v_slab, v_off["pos"], pos_tiled)

    for b, bp in enumerate(params["blocks"]):
        # fold (x@A + a)@C + c == x@(A@C) + (a@C + c) per q/k/v slice, then re-pack
        ws, bs = [], []
        for sl in (slice(0, E), slice(E, 2 * E), slice(2 * E, 3 * E)):
            ws.append(jnp.dot(bp["qkv_w"][:, sl], bp["in_w"][:, sl], precision=hp))
            bs.append(jnp.dot(bp["qkv_b"][sl], bp["in_w"][:, sl], precision=hp)
                      + bp["in_b"][sl])
        w_slab = put(w_slab, w_off[f"wqkv{b}"], jnp.concatenate(ws, axis=1))
        v_slab = put(v_slab, v_off[f"bqkv{b}"], jnp.concatenate(bs, axis=0))

        w_slab = put(w_slab, w_off[f"wout{b}"], bp["out_w"])
        v_slab = put(v_slab, v_off[f"bo{b}"], bp["out_b"])
        v_slab = put(v_slab, v_off[f"g1_{b}"], bp["ln1_g"])
        v_slab = put(v_slab, v_off[f"b1_{b}"], bp["ln1_b"])
        w_slab = put(w_slab, w_off[f"ff1w{b}"], bp["ff1_w"])
        v_slab = put(v_slab, v_off[f"c1_{b}"], bp["ff1_b"])
        w_slab = put(w_slab, w_off[f"ff2w{b}"], bp["ff2_w"])
        v_slab = put(v_slab, v_off[f"c2_{b}"], bp["ff2_b"])
        v_slab = put(v_slab, v_off[f"g2_{b}"], bp["ln2_g"])
        v_slab = put(v_slab, v_off[f"b2_{b}"], bp["ln2_b"])
    return w_slab, v_slab


# ----------------------------- forward wrapper -----------------------------
@jax.jit
def vit_forward_pallas(images, w_slab, v_slab):
    B, C, Himg, Wimg = images.shape
    hp_, wp_ = Himg // PATCH, Wimg // PATCH
    NP = hp_ * wp_
    # Conv2d(kernel=stride=patch) == patchify + matmul (matmul is in-kernel)
    patches = images.reshape(B, C, hp_, PATCH, wp_, PATCH)
    patches = jnp.transpose(patches, (0, 2, 4, 1, 3, 5)).reshape(
        B * NP, C * PATCH * PATCH)

    w_off, w_rows, v_off, v_rows = make_layout(B)
    assert w_slab.shape == (w_rows, SLAB_LANES) and v_slab.shape == (v_rows, SLAB_LANES)

    kernel = functools.partial(_vit_fused_kernel, batch=B, npatch=NP, emb=EMB,
                               heads=NUM_HEADS, eps=LN_EPS,
                               w_off=w_off, v_off=v_off)

    # VMEM budget derived from actual buffer sizes (+ headroom), not a flat cap.
    data_bytes = 4 * (patches.size + w_slab.size + v_slab.size + B * NP * EMB)
    vmem_limit = int(max(4 * 1024 * 1024, 2 * data_bytes + 2 * 1024 * 1024))

    vmem_spec = pl.BlockSpec(memory_space=pltpu.MemorySpace.VMEM)
    out = pl.pallas_call(
        kernel,
        out_shape=jax.ShapeDtypeStruct((B * NP, EMB), jnp.float32),
        in_specs=[vmem_spec, vmem_spec, vmem_spec],
        out_specs=vmem_spec,
        compiler_params=pltpu.CompilerParams(vmem_limit_bytes=vmem_limit),
    )(patches, w_slab, v_slab)
    return out.reshape(B, NP, EMB)


# ----------------- pure-JAX reference (torch semantics) -----------------
def _layernorm_ref(h, g, b, eps=LN_EPS):
    m = jnp.mean(h, axis=-1, keepdims=True)
    v = jnp.mean((h - m) ** 2, axis=-1, keepdims=True)
    return (h - m) / jnp.sqrt(v + eps) * g + b


def transformer_block_ref(x, bp):
    B, N, E = x.shape
    H = NUM_HEADS
    hd = E // H
    x2 = x.reshape(B * N, E)
    qkv = x2 @ bp["qkv_w"] + bp["qkv_b"]
    q, k, v = jnp.split(qkv, 3, axis=-1)
    qp = q @ bp["in_w"][:, :E] + bp["in_b"][:E]
    kp = k @ bp["in_w"][:, E:2 * E] + bp["in_b"][E:2 * E]
    vp = v @ bp["in_w"][:, 2 * E:] + bp["in_b"][2 * E:]

    def to_heads(t):                         # (B*N, E) -> (N*H, B, hd)
        t = t.reshape(B, N, H, hd)
        return jnp.transpose(t, (1, 2, 0, 3)).reshape(N * H, B, hd)

    s = jnp.einsum("bld,bmd->blm", to_heads(qp), to_heads(kp)) / math.sqrt(hd)
    p = jax.nn.softmax(s, axis=-1)
    oh = jnp.einsum("blm,bmd->bld", p, to_heads(vp))
    o = jnp.transpose(oh.reshape(N, H, B, hd), (2, 0, 1, 3)).reshape(B * N, E)
    attn_out = o @ bp["out_w"] + bp["out_b"]
    x2 = _layernorm_ref(x2 + attn_out, bp["ln1_g"], bp["ln1_b"])
    h1 = jnp.maximum(x2 @ bp["ff1_w"] + bp["ff1_b"], 0.0)
    h2 = h1 @ bp["ff2_w"] + bp["ff2_b"]
    x2 = _layernorm_ref(x2 + h2, bp["ln2_g"], bp["ln2_b"])
    return x2.reshape(B, N, E)


def vit_forward_ref(images, params):
    B, C, Himg, Wimg = images.shape
    hp_, wp_ = Himg // PATCH, Wimg // PATCH
    patches = images.reshape(B, C, hp_, PATCH, wp_, PATCH)
    patches = jnp.transpose(patches, (0, 2, 4, 1, 3, 5)).reshape(
        B * hp_ * wp_, C * PATCH * PATCH)
    x = patches @ params["patch_w"] + params["patch_b"]
    x = x.reshape(B, hp_ * wp_, EMB) + params["pos_emb"]
    for bp in params["blocks"]:
        x = transformer_block_ref(x, bp)
    return x


# --------------------------- parameter init ---------------------------
def init_params(key):
    kp, kb, kpos, kblocks = jax.random.split(key, 4)
    params = {
        "patch_w": 0.05 * jax.random.normal(kp, (C_IN * PATCH * PATCH, EMB), jnp.float32),
        "patch_b": 0.05 * jax.random.normal(kb, (EMB,), jnp.float32),
        "pos_emb": jax.random.normal(kpos, (1, NPATCH, EMB), jnp.float32),
        "blocks": [],
    }
    bkeys = jax.random.split(kblocks, NUM_BLOCKS)
    for i in range(NUM_BLOCKS):
        ks = jax.random.split(bkeys[i], 10)
        params["blocks"].append({
            "qkv_w": 0.05 * jax.random.normal(ks[0], (EMB, 3 * EMB), jnp.float32),
            "qkv_b": 0.05 * jax.random.normal(ks[1], (3 * EMB,), jnp.float32),
            "in_w": 0.05 * jax.random.normal(ks[2], (EMB, 3 * EMB), jnp.float32),
            "in_b": 0.05 * jax.random.normal(ks[3], (3 * EMB,), jnp.float32),
            "out_w": 0.05 * jax.random.normal(ks[4], (EMB, EMB), jnp.float32),
            "out_b": 0.05 * jax.random.normal(ks[5], (EMB,), jnp.float32),
            "ln1_g": jnp.ones((EMB,), jnp.float32),
            "ln1_b": jnp.zeros((EMB,), jnp.float32),
            "ln2_g": jnp.ones((EMB,), jnp.float32),
            "ln2_b": jnp.zeros((EMB,), jnp.float32),
            "ff1_w": 0.05 * jax.random.normal(ks[6], (EMB, MLP_HID), jnp.float32),
            "ff1_b": 0.05 * jax.random.normal(ks[7], (MLP_HID,), jnp.float32),
            "ff2_w": 0.05 * jax.random.normal(ks[8], (MLP_HID, EMB), jnp.float32),
            "ff2_b": 0.05 * jax.random.normal(ks[9], (EMB,), jnp.float32),
        })
    return params


if __name__ == "__main__":
    key = jax.random.PRNGKey(0)
    k_img, k_par = jax.random.split(key)
    images = jax.random.normal(k_img, (2, C_IN, IMAGE_SIZE, IMAGE_SIZE), jnp.float32)
    params = init_params(k_par)
    w_slab, v_slab = prepare_params(params, batch=images.shape[0])

    out = jax.block_until_ready(vit_forward_pallas(images, w_slab, v_slab))
    ref = jax.block_until_ready(vit_forward_ref(images, params))

    assert out.shape == (2, NPATCH, EMB), out.shape
    max_err = float(jnp.max(jnp.abs(out - ref)))
    assert jnp.allclose(out, ref, atol=1e-3, rtol=1e-3), max_err
    print("KERNEL_OK")
</pallas_src>

<mosaic_0001>
module attributes {stable_mosaic.version = 11 : i64} {
  func.func @_vit_fused_kernel(%arg0: memref<32x48xf32, #tpu.memory_space<vmem>>, %arg1: memref<536x128xf32, #tpu.memory_space<vmem>>, %arg2: memref<168x128xf32, #tpu.memory_space<vmem>>, %arg3: memref<32x32xf32, #tpu.memory_space<vmem>>) attributes {dimension_semantics = [], scalar_prefetch = 0 : i64, scratch_operands = 0 : i64, tpu.core_type = #tpu.core_type<tc>} {
    %c48 = arith.constant 48 : index
    %c0 = arith.constant 0 : index
    %0 = vector.load %arg1[%c48, %c0] : memref<536x128xf32, #tpu.memory_space<vmem>>, vector<32x8xf32>
    %c80 = arith.constant 80 : index
    %c0_0 = arith.constant 0 : index
    %1 = vector.load %arg1[%c80, %c0_0] : memref<536x128xf32, #tpu.memory_space<vmem>>, vector<8x32xf32>
    %c0_1 = arith.constant 0 : index
    %c0_2 = arith.constant 0 : index
    %2 = vector.load %arg0[%c0_1, %c0_2] : memref<32x48xf32, #tpu.memory_space<vmem>>, vector<32x48xf32>
    %c0_3 = arith.constant 0 : index
    %c0_4 = arith.constant 0 : index
    %3 = vector.load %arg1[%c0_3, %c0_4] : memref<536x128xf32, #tpu.memory_space<vmem>>, vector<48x32xf32>
    %cst = arith.constant dense<0.000000e+00> : vector<32x32xf32>
    %4 = tpu.matmul %2, %3, %cst {dimension_numbers = #tpu.dot_dimension_numbers<[1], [0], [0], [1], [0, 0, 1, 1], [], []>} : vector<32x48xf32>, vector<48x32xf32>, vector<32x32xf32> -> vector<32x32xf32>
    %c32 = arith.constant 32 : index
    %c0_5 = arith.constant 0 : index
    %5 = vector.load %arg2[%c32, %c0_5] : memref<168x128xf32, #tpu.memory_space<vmem>>, vector<1x32xf32>
    %6 = vector.broadcast %5 : vector<1x32xf32> to vector<32x32xf32>
    %7 = arith.addf %4, %6 : vector<32x32xf32>
    %c0_6 = arith.constant 0 : index
    %c0_7 = arith.constant 0 : index
    %8 = vector.load %arg2[%c0_6, %c0_7] : memref<168x128xf32, #tpu.memory_space<vmem>>, vector<32x32xf32>
    %9 = arith.addf %7, %8 : vector<32x32xf32>
    %c88 = arith.constant 88 : index
    %c0_8 = arith.constant 0 : index
    %10 = vector.load %arg1[%c88, %c0_8] : memref<536x128xf32, #tpu.memory_space<vmem>>, vector<32x96xf32>
    %cst_9 = arith.constant dense<0.000000e+00> : vector<32x96xf32>
    %11 = tpu.matmul %9, %10, %cst_9 {dimension_numbers = #tpu.dot_dimension_numbers<[1], [0], [0], [1], [0, 0, 1, 1], [], []>} : vector<32x32xf32>, vector<32x96xf32>, vector<32x96xf32> -> vector<32x96xf32>
    %c40 = arith.constant 40 : index
    %c0_10 = arith.constant 0 : index
    %12 = vector.load %arg2[%c40, %c0_10] : memref<168x128xf32, #tpu.memory_space<vmem>>, vector<1x96xf32>
    %13 = vector.broadcast %12 : vector<1x96xf32> to vector<32x96xf32>
    %14 = arith.addf %11, %13 : vector<32x96xf32>
    %15 = vector.extract_strided_slice %14 {offsets = [0, 0], sizes = [32, 32], strides = [1, 1]} : vector<32x96xf32> to vector<32x32xf32>
    %16 = vector.extract_strided_slice %14 {offsets = [0, 32], sizes = [32, 32], strides = [1, 1]} : vector<32x96xf32> to vector<32x32xf32>
    %17 = vector.extract_strided_slice %14 {offsets = [0, 64], sizes = [32, 32], strides = [1, 1]} : vector<32x96xf32> to vector<32x32xf32>
    %18 = arith.mulf %15, %16 : vector<32x32xf32>
    %cst_11 = arith.constant dense<0.000000e+00> : vector<32x8xf32>
    %19 = tpu.matmul %18, %0, %cst_11 {dimension_numbers = #tpu.dot_dimension_numbers<[1], [0], [0], [1], [0, 0, 1, 1], [], []>} : vector<32x32xf32>, vector<32x8xf32>, vector<32x8xf32> -> vector<32x8xf32>
    %cst_12 = arith.constant 5.000000e-01 : f32
    %20 = vector.broadcast %cst_12 : f32 to vector<32x8xf32>
    %21 = arith.mulf %19, %20 : vector<32x8xf32>
    %c16_i32 = arith.constant 16 : i32
    %22 = tpu.dynamic_rotate %16 by %c16_i32 dim 0 : vector<32x32xf32>, i32 -> vector<32x32xf32>
    %23 = arith.mulf %15, %22 : vector<32x32xf32>
    %cst_13 = arith.constant dense<0.000000e+00> : vector<32x8xf32>
    %24 = tpu.matmul %23, %0, %cst_13 {dimension_numbers = #tpu.dot_dimension_numbers<[1], [0], [0], [1], [0, 0, 1, 1], [], []>} : vector<32x32xf32>, vector<32x8xf32>, vector<32x8xf32> -> vector<32x8xf32>
    %cst_14 = arith.constant 5.000000e-01 : f32
    %25 = vector.broadcast %cst_14 : f32 to vector<32x8xf32>
    %26 = arith.mulf %24, %25 : vector<32x8xf32>
    %27 = arith.maximumf %21, %26 : vector<32x8xf32>
    %28 = arith.subf %21, %27 : vector<32x8xf32>
    %29 = math.exp %28 : vector<32x8xf32>
    %30 = arith.subf %26, %27 : vector<32x8xf32>
    %31 = math.exp %30 : vector<32x8xf32>
    %32 = arith.addf %29, %31 : vector<32x8xf32>
    %33 = tpu.reciprocal %32 {approx = true} : vector<32x8xf32> -> vector<32x8xf32>
    %34 = arith.mulf %29, %33 : vector<32x8xf32>
    %cst_15 = arith.constant dense<0.000000e+00> : vector<32x32xf32>
    %35 = tpu.matmul %34, %1, %cst_15 {dimension_numbers = #tpu.dot_dimension_numbers<[1], [0], [0], [1], [0, 0, 1, 1], [], []>} : vector<32x8xf32>, vector<8x32xf32>, vector<32x32xf32> -> vector<32x32xf32>
    %36 = arith.mulf %35, %17 : vector<32x32xf32>
    %c16_i32_16 = arith.constant 16 : i32
    %37 = tpu.dynamic_rotate %17 by %c16_i32_16 dim 0 : vector<32x32xf32>, i32 -> vector<32x32xf32>
    %38 = arith.mulf %31, %33 : vector<32x8xf32>
    %cst_17 = arith.constant dense<0.000000e+00> : vector<32x32xf32>
    %39 = tpu.matmul %38, %1, %cst_17 {dimension_numbers = #tpu.dot_dimension_numbers<[1], [0], [0], [1], [0, 0, 1, 1], [], []>} : vector<32x8xf32>, vector<8x32xf32>, vector<32x32xf32> -> vector<32x32xf32>
    %40 = arith.mulf %39, %37 : vector<32x32xf32>
    %41 = arith.addf %36, %40 : vector<32x32xf32>
    %c120 = arith.constant 120 : index
    %c0_18 = arith.constant 0 : index
    %42 = vector.load %arg1[%c120, %c0_18] : memref<536x128xf32, #tpu.memory_space<vmem>>, vector<32x32xf32>
    %cst_19 = arith.constant dense<0.000000e+00> : vector<32x32xf32>
    %43 = tpu.matmul %41, %42, %cst_19 {dimension_numbers = #tpu.dot_dimension_numbers<[1], [0], [0], [1], [0, 0, 1, 1], [], []>} : vector<32x32xf32>, vector<32x32xf32>, vector<32x32xf32> -> vector<32x32xf32>
    %c48_20 = arith.constant 48 : index
    %c0_21 = arith.constant 0 : index
    %44 = vector.load %arg2[%c48_20, %c0_21] : memref<168x128xf32, #tpu.memory_space<vmem>>, vector<1x32xf32>
    %45 = vector.broadcast %44 : vector<1x32xf32> to vector<32x32xf32>
    %46 = arith.addf %43, %45 : vector<32x32xf32>
    %47 = arith.addf %9, %46 : vector<32x32xf32>
    %c56 = arith.constant 56 : index
    %c0_22 = arith.constant 0 : index
    %48 = vector.load %arg2[%c56, %c0_22] : memref<168x128xf32, #tpu.memory_space<vmem>>, vector<1x32xf32>
    %c64 = arith.constant 64 : index
    %c0_23 = arith.constant 0 : index
    %49 = vector.load %arg2[%c64, %c0_23] : memref<168x128xf32, #tpu.memory_space<vmem>>, vector<1x32xf32>
    %cst_24 = arith.constant dense<0.000000e+00> : vector<32xf32>
    %50 = vector.multi_reduction <add>, %47, %cst_24 [1] : vector<32x32xf32> to vector<32xf32>
    %51 = vector.shape_cast %50 : vector<32xf32> to vector<32x1xf32>
    %cst_25 = arith.constant 3.200000e+01 : f32
    %52 = vector.broadcast %cst_25 : f32 to vector<32x1xf32>
    %53 = arith.divf %51, %52 : vector<32x1xf32>
    %54 = vector.broadcast %53 : vector<32x1xf32> to vector<32x32xf32>
    %55 = arith.subf %47, %54 : vector<32x32xf32>
    %56 = arith.mulf %55, %55 : vector<32x32xf32>
    %cst_26 = arith.constant dense<0.000000e+00> : vector<32xf32>
    %57 = vector.multi_reduction <add>, %56, %cst_26 [1] : vector<32x32xf32> to vector<32xf32>
    %58 = vector.shape_cast %57 : vector<32xf32> to vector<32x1xf32>
    %cst_27 = arith.constant 3.200000e+01 : f32
    %59 = vector.broadcast %cst_27 : f32 to vector<32x1xf32>
    %60 = arith.divf %58, %59 : vector<32x1xf32>
    %61 = vector.broadcast %53 : vector<32x1xf32> to vector<32x32xf32>
    %62 = arith.subf %47, %61 : vector<32x32xf32>
    %cst_28 = arith.constant 9.99999974E-6 : f32
    %63 = vector.broadcast %cst_28 : f32 to vector<32x1xf32>
    %64 = arith.addf %60, %63 : vector<32x1xf32>
    %65 = math.rsqrt %64 : vector<32x1xf32>
    %66 = vector.broadcast %65 : vector<32x1xf32> to vector<32x32xf32>
    %67 = arith.mulf %62, %66 : vector<32x32xf32>
    %68 = vector.broadcast %48 : vector<1x32xf32> to vector<32x32xf32>
    %69 = arith.mulf %67, %68 : vector<32x32xf32>
    %70 = vector.broadcast %49 : vector<1x32xf32> to vector<32x32xf32>
    %71 = arith.addf %69, %70 : vector<32x32xf32>
    %c152 = arith.constant 152 : index
    %c0_29 = arith.constant 0 : index
    %72 = vector.load %arg1[%c152, %c0_29] : memref<536x128xf32, #tpu.memory_space<vmem>>, vector<32x128xf32>
    %cst_30 = arith.constant dense<0.000000e+00> : vector<32x128xf32>
    %73 = tpu.matmul %71, %72, %cst_30 {dimension_numbers = #tpu.dot_dimension_numbers<[1], [0], [0], [1], [0, 0, 1, 1], [], []>} : vector<32x32xf32>, vector<32x128xf32>, vector<32x128xf32> -> vector<32x128xf32>
    %c72 = arith.constant 72 : index
    %c0_31 = arith.constant 0 : index
    %74 = vector.load %arg2[%c72, %c0_31] : memref<168x128xf32, #tpu.memory_space<vmem>>, vector<1x128xf32>
    %75 = vector.broadcast %74 : vector<1x128xf32> to vector<32x128xf32>
    %76 = arith.addf %73, %75 : vector<32x128xf32>
    %cst_32 = arith.constant 0.000000e+00 : f32
    %77 = vector.broadcast %cst_32 : f32 to vector<32x128xf32>
    %78 = arith.maximumf %76, %77 : vector<32x128xf32>
    %c184 = arith.constant 184 : index
    %c0_33 = arith.constant 0 : index
    %79 = vector.load %arg1[%c184, %c0_33] : memref<536x128xf32, #tpu.memory_space<vmem>>, vector<128x32xf32>
    %cst_34 = arith.constant dense<0.000000e+00> : vector<32x32xf32>
    %80 = tpu.matmul %78, %79, %cst_34 {dimension_numbers = #tpu.dot_dimension_numbers<[1], [0], [0], [1], [0, 0, 1, 1], [], []>} : vector<32x128xf32>, vector<128x32xf32>, vector<32x32xf32> -> vector<32x32xf32>
    %c80_35 = arith.constant 80 : index
    %c0_36 = arith.constant 0 : index
    %81 = vector.load %arg2[%c80_35, %c0_36] : memref<168x128xf32, #tpu.memory_space<vmem>>, vector<1x32xf32>
    %82 = vector.broadcast %81 : vector<1x32xf32> to vector<32x32xf32>
    %83 = arith.addf %80, %82 : vector<32x32xf32>
    %84 = arith.addf %71, %83 : vector<32x32xf32>
    %c88_37 = arith.constant 88 : index
    %c0_38 = arith.constant 0 : index
    %85 = vector.load %arg2[%c88_37, %c0_38] : memref<168x128xf32, #tpu.memory_space<vmem>>, vector<1x32xf32>
    %c96 = arith.constant 96 : index
    %c0_39 = arith.constant 0 : index
    %86 = vector.load %arg2[%c96, %c0_39] : memref<168x128xf32, #tpu.memory_space<vmem>>, vector<1x32xf32>
    %cst_40 = arith.constant dense<0.000000e+00> : vector<32xf32>
    %87 = vector.multi_reduction <add>, %84, %cst_40 [1] : vector<32x32xf32> to vector<32xf32>
    %88 = vector.shape_cast %87 : vector<32xf32> to vector<32x1xf32>
    %cst_41 = arith.constant 3.200000e+01 : f32
    %89 = vector.broadcast %cst_41 : f32 to vector<32x1xf32>
    %90 = arith.divf %88, %89 : vector<32x1xf32>
    %91 = vector.broadcast %90 : vector<32x1xf32> to vector<32x32xf32>
    %92 = arith.subf %84, %91 : vector<32x32xf32>
    %93 = arith.mulf %92, %92 : vector<32x32xf32>
    %cst_42 = arith.constant dense<0.000000e+00> : vector<32xf32>
    %94 = vector.multi_reduction <add>, %93, %cst_42 [1] : vector<32x32xf32> to vector<32xf32>
    %95 = vector.shape_cast %94 : vector<32xf32> to vector<32x1xf32>
    %cst_43 = arith.constant 3.200000e+01 : f32
    %96 = vector.broadcast %cst_43 : f32 to vector<32x1xf32>
    %97 = arith.divf %95, %96 : vector<32x1xf32>
    %98 = vector.broadcast %90 : vector<32x1xf32> to vector<32x32xf32>
    %99 = arith.subf %84, %98 : vector<32x32xf32>
    %cst_44 = arith.constant 9.99999974E-6 : f32
    %100 = vector.broadcast %cst_44 : f32 to vector<32x1xf32>
    %101 = arith.addf %97, %100 : vector<32x1xf32>
    %102 = math.rsqrt %101 : vector<32x1xf32>
    %103 = vector.broadcast %102 : vector<32x1xf32> to vector<32x32xf32>
    %104 = arith.mulf %99, %103 : vector<32x32xf32>
    %105 = vector.broadcast %85 : vector<1x32xf32> to vector<32x32xf32>
    %106 = arith.mulf %104, %105 : vector<32x32xf32>
    %107 = vector.broadcast %86 : vector<1x32xf32> to vector<32x32xf32>
    %108 = arith.addf %106, %107 : vector<32x32xf32>
    %c312 = arith.constant 312 : index
    %c0_45 = arith.constant 0 : index
    %109 = vector.load %arg1[%c312, %c0_45] : memref<536x128xf32, #tpu.memory_space<vmem>>, vector<32x96xf32>
    %cst_46 = arith.constant dense<0.000000e+00> : vector<32x96xf32>
    %110 = tpu.matmul %108, %109, %cst_46 {dimension_numbers = #tpu.dot_dimension_numbers<[1], [0], [0], [1], [0, 0, 1, 1], [], []>} : vector<32x32xf32>, vector<32x96xf32>, vector<32x96xf32> -> vector<32x96xf32>
    %c104 = arith.constant 104 : index
    %c0_47 = arith.constant 0 : index
    %111 = vector.load %arg2[%c104, %c0_47] : memref<168x128xf32, #tpu.memory_space<vmem>>, vector<1x96xf32>
    %112 = vector.broadcast %111 : vector<1x96xf32> to vector<32x96xf32>
    %113 = arith.addf %110, %112 : vector<32x96xf32>
    %114 = vector.extract_strided_slice %113 {offsets = [0, 0], sizes = [32, 32], strides = [1, 1]} : vector<32x96xf32> to vector<32x32xf32>
    %115 = vector.extract_strided_slice %113 {offsets = [0, 32], sizes = [32, 32], strides = [1, 1]} : vector<32x96xf32> to vector<32x32xf32>
    %116 = vector.extract_strided_slice %113 {offsets = [0, 64], sizes = [32, 32], strides = [1, 1]} : vector<32x96xf32> to vector<32x32xf32>
    %117 = arith.mulf %114, %115 : vector<32x32xf32>
    %cst_48 = arith.constant dense<0.000000e+00> : vector<32x8xf32>
    %118 = tpu.matmul %117, %0, %cst_48 {dimension_numbers = #tpu.dot_dimension_numbers<[1], [0], [0], [1], [0, 0, 1, 1], [], []>} : vector<32x32xf32>, vector<32x8xf32>, vector<32x8xf32> -> vector<32x8xf32>
    %cst_49 = arith.constant 5.000000e-01 : f32
    %119 = vector.broadcast %cst_49 : f32 to vector<32x8xf32>
    %120 = arith.mulf %118, %119 : vector<32x8xf32>
    %c16_i32_50 = arith.constant 16 : i32
    %121 = tpu.dynamic_rotate %115 by %c16_i32_50 dim 0 : vector<32x32xf32>, i32 -> vector<32x32xf32>
    %122 = arith.mulf %114, %121 : vector<32x32xf32>
    %cst_51 = arith.constant dense<0.000000e+00> : vector<32x8xf32>
    %123 = tpu.matmul %122, %0, %cst_51 {dimension_numbers = #tpu.dot_dimension_numbers<[1], [0], [0], [1], [0, 0, 1, 1], [], []>} : vector<32x32xf32>, vector<32x8xf32>, vector<32x8xf32> -> vector<32x8xf32>
    %cst_52 = arith.constant 5.000000e-01 : f32
    %124 = vector.broadcast %cst_52 : f32 to vector<32x8xf32>
    %125 = arith.mulf %123, %124 : vector<32x8xf32>
    %126 = arith.maximumf %120, %125 : vector<32x8xf32>
    %127 = arith.subf %120, %126 : vector<32x8xf32>
    %128 = math.exp %127 : vector<32x8xf32>
    %129 = arith.subf %125, %126 : vector<32x8xf32>
    %130 = math.exp %129 : vector<32x8xf32>
    %131 = arith.addf %128, %130 : vector<32x8xf32>
    %132 = tpu.reciprocal %131 {approx = true} : vector<32x8xf32> -> vector<32x8xf32>
    %133 = arith.mulf %128, %132 : vector<32x8xf32>
    %cst_53 = arith.constant dense<0.000000e+00> : vector<32x32xf32>
    %134 = tpu.matmul %133, %1, %cst_53 {dimension_numbers = #tpu.dot_dimension_numbers<[1], [0], [0], [1], [0, 0, 1, 1], [], []>} : vector<32x8xf32>, vector<8x32xf32>, vector<32x32xf32> -> vector<32x32xf32>
    %135 = arith.mulf %134, %116 : vector<32x32xf32>
    %c16_i32_54 = arith.constant 16 : i32
    %136 = tpu.dynamic_rotate %116 by %c16_i32_54 dim 0 : vector<32x32xf32>, i32 -> vector<32x32xf32>
    %137 = arith.mulf %130, %132 : vector<32x8xf32>
    %cst_55 = arith.constant dense<0.000000e+00> : vector<32x32xf32>
    %138 = tpu.matmul %137, %1, %cst_55 {dimension_numbers = #tpu.dot_dimension_numbers<[1], [0], [0], [1], [0, 0, 1, 1], [], []>} : vector<32x8xf32>, vector<8x32xf32>, vector<32x32xf32> -> vector<32x32xf32>
    %139 = arith.mulf %138, %136 : vector<32x32xf32>
    %140 = arith.addf %135, %139 : vector<32x32xf32>
    %c344 = arith.constant 344 : index
    %c0_56 = arith.constant 0 : index
    %141 = vector.load %arg1[%c344, %c0_56] : memref<536x128xf32, #tpu.memory_space<vmem>>, vector<32x32xf32>
    %cst_57 = arith.constant dense<0.000000e+00> : vector<32x32xf32>
    %142 = tpu.matmul %140, %141, %cst_57 {dimension_numbers = #tpu.dot_dimension_numbers<[1], [0], [0], [1], [0, 0, 1, 1], [], []>} : vector<32x32xf32>, vector<32x32xf32>, vector<32x32xf32> -> vector<32x32xf32>
    %c112 = arith.constant 112 : index
    %c0_58 = arith.constant 0 : index
    %143 = vector.load %arg2[%c112, %c0_58] : memref<168x128xf32, #tpu.memory_space<vmem>>, vector<1x32xf32>
    %144 = vector.broadcast %143 : vector<1x32xf32> to vector<32x32xf32>
    %145 = arith.addf %142, %144 : vector<32x32xf32>
    %146 = arith.addf %108, %145 : vector<32x32xf32>
    %c120_59 = arith.constant 120 : index
    %c0_60 = arith.constant 0 : index
    %147 = vector.load %arg2[%c120_59, %c0_60] : memref<168x128xf32, #tpu.memory_space<vmem>>, vector<1x32xf32>
    %c128 = arith.constant 128 : index
    %c0_61 = arith.constant 0 : index
    %148 = vector.load %arg2[%c128, %c0_61] : memref<168x128xf32, #tpu.memory_space<vmem>>, vector<1x32xf32>
    %cst_62 = arith.constant dense<0.000000e+00> : vector<32xf32>
    %149 = vector.multi_reduction <add>, %146, %cst_62 [1] : vector<32x32xf32> to vector<32xf32>
    %150 = vector.shape_cast %149 : vector<32xf32> to vector<32x1xf32>
    %cst_63 = arith.constant 3.200000e+01 : f32
    %151 = vector.broadcast %cst_63 : f32 to vector<32x1xf32>
    %152 = arith.divf %150, %151 : vector<32x1xf32>
    %153 = vector.broadcast %152 : vector<32x1xf32> to vector<32x32xf32>
    %154 = arith.subf %146, %153 : vector<32x32xf32>
    %155 = arith.mulf %154, %154 : vector<32x32xf32>
    %cst_64 = arith.constant dense<0.000000e+00> : vector<32xf32>
    %156 = vector.multi_reduction <add>, %155, %cst_64 [1] : vector<32x32xf32> to vector<32xf32>
    %157 = vector.shape_cast %156 : vector<32xf32> to vector<32x1xf32>
    %cst_65 = arith.constant 3.200000e+01 : f32
    %158 = vector.broadcast %cst_65 : f32 to vector<32x1xf32>
    %159 = arith.divf %157, %158 : vector<32x1xf32>
    %160 = vector.broadcast %152 : vector<32x1xf32> to vector<32x32xf32>
    %161 = arith.subf %146, %160 : vector<32x32xf32>
    %cst_66 = arith.constant 9.99999974E-6 : f32
    %162 = vector.broadcast %cst_66 : f32 to vector<32x1xf32>
    %163 = arith.addf %159, %162 : vector<32x1xf32>
    %164 = math.rsqrt %163 : vector<32x1xf32>
    %165 = vector.broadcast %164 : vector<32x1xf32> to vector<32x32xf32>
    %166 = arith.mulf %161, %165 : vector<32x32xf32>
    %167 = vector.broadcast %147 : vector<1x32xf32> to vector<32x32xf32>
    %168 = arith.mulf %166, %167 : vector<32x32xf32>
    %169 = vector.broadcast %148 : vector<1x32xf32> to vector<32x32xf32>
    %170 = arith.addf %168, %169 : vector<32x32xf32>
    %c376 = arith.constant 376 : index
    %c0_67 = arith.constant 0 : index
    %171 = vector.load %arg1[%c376, %c0_67] : memref<536x128xf32, #tpu.memory_space<vmem>>, vector<32x128xf32>
    %cst_68 = arith.constant dense<0.000000e+00> : vector<32x128xf32>
    %172 = tpu.matmul %170, %171, %cst_68 {dimension_numbers = #tpu.dot_dimension_numbers<[1], [0], [0], [1], [0, 0, 1, 1], [], []>} : vector<32x32xf32>, vector<32x128xf32>, vector<32x128xf32> -> vector<32x128xf32>
    %c136 = arith.constant 136 : index
    %c0_69 = arith.constant 0 : index
    %173 = vector.load %arg2[%c136, %c0_69] : memref<168x128xf32, #tpu.memory_space<vmem>>, vector<1x128xf32>
    %174 = vector.broadcast %173 : vector<1x128xf32> to vector<32x128xf32>
    %175 = arith.addf %172, %174 : vector<32x128xf32>
    %cst_70 = arith.constant 0.000000e+00 : f32
    %176 = vector.broadcast %cst_70 : f32 to vector<32x128xf32>
    %177 = arith.maximumf %175, %176 : vector<32x128xf32>
    %c408 = arith.constant 408 : index
    %c0_71 = arith.constant 0 : index
    %178 = vector.load %arg1[%c408, %c0_71] : memref<536x128xf32, #tpu.memory_space<vmem>>, vector<128x32xf32>
    %cst_72 = arith.constant dense<0.000000e+00> : vector<32x32xf32>
    %179 = tpu.matmul %177, %178, %cst_72 {dimension_numbers = #tpu.dot_dimension_numbers<[1], [0], [0], [1], [0, 0, 1, 1], [], []>} : vector<32x128xf32>, vector<128x32xf32>, vector<32x32xf32> -> vector<32x32xf32>
    %c144 = arith.constant 144 : index
    %c0_73 = arith.constant 0 : index
    %180 = vector.load %arg2[%c144, %c0_73] : memref<168x128xf32, #tpu.memory_space<vmem>>, vector<1x32xf32>
    %181 = vector.broadcast %180 : vector<1x32xf32> to vector<32x32xf32>
    %182 = arith.addf %179, %181 : vector<32x32xf32>
    %183 = arith.addf %170, %182 : vector<32x32xf32>
    %c152_74 = arith.constant 152 : index
    %c0_75 = arith.constant 0 : index
    %184 = vector.load %arg2[%c152_74, %c0_75] : memref<168x128xf32, #tpu.memory_space<vmem>>, vector<1x32xf32>
    %c160 = arith.constant 160 : index
    %c0_76 = arith.constant 0 : index
    %185 = vector.load %arg2[%c160, %c0_76] : memref<168x128xf32, #tpu.memory_space<vmem>>, vector<1x32xf32>
    %cst_77 = arith.constant dense<0.000000e+00> : vector<32xf32>
    %186 = vector.multi_reduction <add>, %183, %cst_77 [1] : vector<32x32xf32> to vector<32xf32>
    %187 = vector.shape_cast %186 : vector<32xf32> to vector<32x1xf32>
    %cst_78 = arith.constant 3.200000e+01 : f32
    %188 = vector.broadcast %cst_78 : f32 to vector<32x1xf32>
    %189 = arith.divf %187, %188 : vector<32x1xf32>
    %190 = vector.broadcast %189 : vector<32x1xf32> to vector<32x32xf32>
    %191 = arith.subf %183, %190 : vector<32x32xf32>
    %192 = arith.mulf %191, %191 : vector<32x32xf32>
    %cst_79 = arith.constant dense<0.000000e+00> : vector<32xf32>
    %193 = vector.multi_reduction <add>, %192, %cst_79 [1] : vector<32x32xf32> to vector<32xf32>
    %194 = vector.shape_cast %193 : vector<32xf32> to vector<32x1xf32>
    %cst_80 = arith.constant 3.200000e+01 : f32
    %195 = vector.broadcast %cst_80 : f32 to vector<32x1xf32>
    %196 = arith.divf %194, %195 : vector<32x1xf32>
    %197 = vector.broadcast %189 : vector<32x1xf32> to vector<32x32xf32>
    %198 = arith.subf %183, %197 : vector<32x32xf32>
    %cst_81 = arith.constant 9.99999974E-6 : f32
    %199 = vector.broadcast %cst_81 : f32 to vector<32x1xf32>
    %200 = arith.addf %196, %199 : vector<32x1xf32>
    %201 = math.rsqrt %200 : vector<32x1xf32>
    %202 = vector.broadcast %201 : vector<32x1xf32> to vector<32x32xf32>
    %203 = arith.mulf %198, %202 : vector<32x32xf32>
    %204 = vector.broadcast %184 : vector<1x32xf32> to vector<32x32xf32>
    %205 = arith.mulf %203, %204 : vector<32x32xf32>
    %206 = vector.broadcast %185 : vector<1x32xf32> to vector<32x32xf32>
    %207 = arith.addf %205, %206 : vector<32x32xf32>
    %c0_82 = arith.constant 0 : index
    %c0_83 = arith.constant 0 : index
    %208 = vector.load %arg3[%c0_82, %c0_83] : memref<32x32xf32, #tpu.memory_space<vmem>>, vector<32x32xf32>
    tpu.vector_store %arg3[%c0_82, %c0_83], %207 {strides = array<i32>} : memref<32x32xf32, #tpu.memory_space<vmem>>, vector<32x32xf32>,
    return
  }
}

</mosaic_0001>

<llo_original>
// kernel: vit_forward_pallas.1
$region0: #{vit_forward_pallas.1}
  #allocation0 [shape = 'u32[]', space=smem, size = 0x4, offset = 0x4, fixed_abs, tag = 'smem constant byte address 0x4 - core index']
  #allocation1 [shape = 'u32[144,128]{1,0:T(1,128)}', space=vmem, size = 0x12000, scoped, tag = 'internal scratch']
  %s0 = inlined_call_operand.vmem [shape: f32[32,48], index: 0, kind: input, shape index: {}]
  %s1 = inlined_call_operand.vmem [shape: f32[536,128], index: 1, kind: input, shape index: {}]
  %s2 = inlined_call_operand.vmem [shape: f32[168,128], index: 2, kind: input, shape index: {}]
  %s3 = inlined_call_operand.hbm [shape: f32[32,32], index: 3, kind: output, shape index: {}]
  %s4 = sld [smem:[#allocation0]]
  $region22: #{vit_forward_pallas.1} parent=0
    _
  %s6 = ssub.s32 1, %s4
  %s7 = scalar_select 0, %s6, %s4
  $region1: #{vit_forward_pallas.1} parent=0
    #allocation2 [shape = 'u8[16384]{0}', space=vmem, size = 0x4000, scoped, tag = 'output window, operand 0, single buffered']
    #allocation3 [shape = 's32[1]{0}', space=sflag, size = 0x4, scoped, tag = 'scoped memory for vit_forward_pallas.1']
    %8 = vsyncpa [#allocation3], 0
    // Predicated region
    $region2: #{vit_forward_pallas.1} parent=1 // pred_check
      _
    $region3: #{vit_forward_pallas.1} parent=1 // pred_check_branch
      %10 = sbr.rel (0) target = $region5
    $region4: #{vit_forward_pallas.1} parent=1 // pred_region
      _
    $region5: #{vit_forward_pallas.1} parent=1 // pred_fallthru
      _
    // Predicated region
    $region6: #{vit_forward_pallas.1} parent=1 // pred_check
      _
    $region7: #{vit_forward_pallas.1} parent=1 // pred_check_branch
      %12 = sbr.rel (0) target = $region9
    $region8: #{vit_forward_pallas.1} parent=1 // pred_region
      _
    $region9: #{vit_forward_pallas.1} parent=1 // pred_fallthru
      _
    // Predicated region
    $region10: #{vit_forward_pallas.1} parent=1 // pred_check
      _
    $region11: #{vit_forward_pallas.1} parent=1 // pred_check_branch
      %14 = sbr.rel (0) target = $region13
    $region12: #{vit_forward_pallas.1} parent=1 // pred_region
      _
    $region13: #{vit_forward_pallas.1} parent=1 // pred_fallthru
      _
    %v15 = vld [vmem:[%s1 + $0x30] sm:$0xff]
    %v16 = vld [vmem:[%s1 + $0x38] sm:$0xff]
    %v17 = vld [vmem:[%s1 + $0x40] sm:$0xff]
    %v18 = vld [vmem:[%s1 + $0x48] sm:$0xff]
    %v19 = vld [vmem:[%s1 + $0x50] sm:$0xff]
    %v20 = vld [vmem:[%s0] sm:$0xff]
    %v21 = vld [vmem:[%s0 + $0x8] sm:$0xff]
    %v22 = vld [vmem:[%s0 + $0x10] sm:$0xff]
    %v23 = vld [vmem:[%s0 + $0x18] sm:$0xff]
    %v24 = vld [vmem:[%s1] sm:$0xff]
    %v25 = vld [vmem:[%s1 + $0x8] sm:$0xff]
    %v26 = vld [vmem:[%s1 + $0x10] sm:$0xff]
    %v27 = vld [vmem:[%s1 + $0x18] sm:$0xff]
    %v28 = vld [vmem:[%s1 + $0x20] sm:$0xff]
    %v29 = vld [vmem:[%s1 + $0x28] sm:$0xff]
    %v30 = vld [vmem:[%s2 + $0x20] sm:$0x1]
    %v31 = vlaneseq
    %v32 = vshrl.u32 %v31, 7
    %v33 = vsub.s32 0, %v32
    %v34 = vrot.slane %v30, %v33
    %vm35 = vcmask 392192
    %v37 = vsel %vm35, %v20, 0
    %v40 = vsel %vm35, %v21, 0
    %v43 = vsel %vm35, %v22, 0
    %v46 = vsel %vm35, %v23, 0
    %48 = vmatprep.subr.mxu0 0.0
    %49 = vmatpush1.msra.mxu0 0.0
    %50 = vmatprep.subr.mxu0 0.0
    %51 = vmatpush1.msra.mxu0 0.0
    %52 = vmatprep.subr.mxu0 0.0
    %53 = vmatpush1.msra.mxu0 0.0
    %54 = vmatprep.subr.mxu0 0.0
    %55 = vmatpush1.msra.mxu0 0.0
    %56 = vmatprep.subr.mxu0 0.0
    %57 = vmatpush1.msra.mxu0 0.0
    %58 = vmatprep.subr.mxu0 0.0
    %59 = vmatpush1.msra.mxu0 0.0
    %60 = vmatprep.subr.mxu0 0.0
    %61 = vmatpush1.msra.mxu0 0.0
    %62 = vmatprep.subr.mxu0 0.0
    %63 = vmatpush1.msra.mxu0 0.0
    %64 = vmatprep.subr.mxu0 0.0
    %65 = vmatpush1.msra.mxu0 0.0
    %66 = vmatprep.subr.mxu0 0.0
    %67 = vmatpush1.msra.mxu0 0.0
    %68 = vmatprep.subr.mxu0 0.0
    %69 = vmatpush1.msra.mxu0 %v29
    %70 = vmatprep.subr.mxu0 0.0
    %71 = vmatpush1.msra.mxu0 %v28
    %72 = vmatprep.subr.mxu0 0.0
    %73 = vmatpush1.msra.mxu0 %v27
    %74 = vmatprep.subr.mxu0 0.0
    %75 = vmatpush1.msra.mxu0 %v26
    %76 = vmatprep.subr.mxu0 0.0
    %77 = vmatpush1.msra.mxu0 %v25
    %78 = vmatprep.subr.mxu0 0.0
    %79 = vmatpush1.msra.mxu0 %v24
    %80 = vmatprep.subr.mxu0 0.0
    %81 = vmatpush2.msra.mxu0 0.0
    %82 = vmatprep.subr.mxu0 0.0
    %83 = vmatpush2.msra.mxu0 0.0
    %84 = vmatprep.subr.mxu0 0.0
    %85 = vmatpush2.msra.mxu0 0.0
    %86 = vmatprep.subr.mxu0 0.0
    %87 = vmatpush2.msra.mxu0 0.0
    %88 = vmatprep.subr.mxu0 0.0
    %89 = vmatpush2.msra.mxu0 0.0
    %90 = vmatprep.subr.mxu0 0.0
    %91 = vmatpush2.msra.mxu0 0.0
    %92 = vmatprep.subr.mxu0 0.0
    %93 = vmatpush2.msra.mxu0 0.0
    %94 = vmatprep.subr.mxu0 0.0
    %95 = vmatpush2.msra.mxu0 0.0
    %96 = vmatprep.subr.mxu0 0.0
    %97 = vmatpush2.msra.mxu0 0.0
    %98 = vmatprep.subr.mxu0 0.0
    %99 = vmatpush2.msra.mxu0 0.0
    %100 = vmatprep.subr.mxu0 0.0
    %101 = vmatpush2.msra.mxu0 0.0
    %102 = vmatprep.subr.mxu0 0.0
    %103 = vmatpush2.msra.mxu0 0.0
    %104 = vmatprep.subr.mxu0 0.0
    %105 = vmatpush2.msra.mxu0 0.0
    %106 = vmatprep.subr.mxu0 0.0
    %107 = vmatpush2.msra.mxu0 0.0
    %108 = vmatprep.subr.mxu0 0.0
    %109 = vmatpush2.msra.mxu0 0.0
    %110 = vmatprep.subr.mxu0 0.0
    %111 = vmatpush2.msra.mxu0 0.0
    %112 = vmatprep.mubr.f32.mxu0 0.0
    %113 = vmatmul.mubr.f32.gmra.mxu0 %v37
    %v114 = vpop.f32.mrf.mxu0
    %v115 = vadd.f32 %v34, %v114
    %v116 = vpop.f32.mrf.mxu0
    %117 = vmatprep.mubr.f32.mxu0 0.0
    %118 = vmatmul.mubr.f32.gmra.mxu0 %v40
    %v119 = vpop.f32.mrf.mxu0
    %v120 = vadd.f32 %v34, %v119
    %v121 = vpop.f32.mrf.mxu0
    %122 = vmatprep.mubr.f32.mxu0 0.0
    %123 = vmatmul.mubr.f32.gmra.mxu0 %v43
    %v124 = vpop.f32.mrf.mxu0
    %v125 = vadd.f32 %v34, %v124
    %v126 = vpop.f32.mrf.mxu0
    %127 = vmatprep.mubr.f32.mxu0 0.0
    %128 = vmatmul.mubr.f32.gmra.mxu0 %v46
    %v129 = vpop.f32.mrf.mxu0
    %v130 = vadd.f32 %v34, %v129
    %v131 = vpop.f32.mrf.mxu0
    %132 = vdwg.mxu0
    %v133 = vld [vmem:[%s2] sm:$0xff]
    %v134 = vld [vmem:[%s2 + $0x8] sm:$0xff]
    %v135 = vld [vmem:[%s2 + $0x10] sm:$0xff]
    %v136 = vld [vmem:[%s2 + $0x18] sm:$0xff]
    %v137 = vadd.f32 %v115, %v133
    %v138 = vadd.f32 %v120, %v134
    %v139 = vadd.f32 %v125, %v135
    %v140 = vadd.f32 %v130, %v136
    %v141 = vld [vmem:[%s1 + $0x58] sm:$0xff]
    %v142 = vld [vmem:[%s1 + $0x60] sm:$0xff]
    %v143 = vld [vmem:[%s1 + $0x68] sm:$0xff]
    %v144 = vld [vmem:[%s1 + $0x70] sm:$0xff]
    %v145 = vld [vmem:[%s2 + $0x28] sm:$0x1]
    %v146 = vlaneseq
    %v147 = vshrl.u32 %v146, 7
    %v148 = vsub.s32 0, %v147
    %v149 = vrot.slane %v145, %v148
    %vm150 = vcmask 261120
    %v152 = vsel %vm150, %v137, 0
    %v155 = vsel %vm150, %v138, 0
    %v158 = vsel %vm150, %v139, 0
    %v161 = vsel %vm150, %v140, 0
    %163 = vmatprep.subr.mxu0 0.0
    %164 = vmatpush1.msra.mxu0 0.0
    %165 = vmatprep.subr.mxu0 0.0
    %166 = vmatpush1.msra.mxu0 0.0
    %167 = vmatprep.subr.mxu0 0.0
    %168 = vmatpush1.msra.mxu0 0.0
    %169 = vmatprep.subr.mxu0 0.0
    %170 = vmatpush1.msra.mxu0 0.0
    %171 = vmatprep.subr.mxu0 0.0
    %172 = vmatpush1.msra.mxu0 0.0
    %173 = vmatprep.subr.mxu0 0.0
    %174 = vmatpush1.msra.mxu0 0.0
    %175 = vmatprep.subr.mxu0 0.0
    %176 = vmatpush1.msra.mxu0 0.0
    %177 = vmatprep.subr.mxu0 0.0
    %178 = vmatpush1.msra.mxu0 0.0
    %179 = vmatprep.subr.mxu0 0.0
    %180 = vmatpush1.msra.mxu0 0.0
    %181 = vmatprep.subr.mxu0 0.0
    %182 = vmatpush1.msra.mxu0 0.0
    %183 = vmatprep.subr.mxu0 0.0
    %184 = vmatpush1.msra.mxu0 0.0
    %185 = vmatprep.subr.mxu0 0.0
    %186 = vmatpush1.msra.mxu0 0.0
    %187 = vmatprep.subr.mxu0 0.0
    %188 = vmatpush1.msra.mxu0 %v144
    %189 = vmatprep.subr.mxu0 0.0
    %190 = vmatpush1.msra.mxu0 %v143
    %191 = vmatprep.subr.mxu0 0.0
    %192 = vmatpush1.msra.mxu0 %v142
    %193 = vmatprep.subr.mxu0 0.0
    %194 = vmatpush1.msra.mxu0 %v141
    %195 = vmatprep.subr.mxu0 0.0
    %196 = vmatpush2.msra.mxu0 0.0
    %197 = vmatprep.subr.mxu0 0.0
    %198 = vmatpush2.msra.mxu0 0.0
    %199 = vmatprep.subr.mxu0 0.0
    %200 = vmatpush2.msra.mxu0 0.0
    %201 = vmatprep.subr.mxu0 0.0
    %202 = vmatpush2.msra.mxu0 0.0
    %203 = vmatprep.subr.mxu0 0.0
    %204 = vmatpush2.msra.mxu0 0.0
    %205 = vmatprep.subr.mxu0 0.0
    %206 = vmatpush2.msra.mxu0 0.0
    %207 = vmatprep.subr.mxu0 0.0
    %208 = vmatpush2.msra.mxu0 0.0
    %209 = vmatprep.subr.mxu0 0.0
    %210 = vmatpush2.msra.mxu0 0.0
    %211 = vmatprep.subr.mxu0 0.0
    %212 = vmatpush2.msra.mxu0 0.0
    %213 = vmatprep.subr.mxu0 0.0
    %214 = vmatpush2.msra.mxu0 0.0
    %215 = vmatprep.subr.mxu0 0.0
    %216 = vmatpush2.msra.mxu0 0.0
    %217 = vmatprep.subr.mxu0 0.0
    %218 = vmatpush2.msra.mxu0 0.0
    %219 = vmatprep.subr.mxu0 0.0
    %220 = vmatpush2.msra.mxu0 0.0
    %221 = vmatprep.subr.mxu0 0.0
    %222 = vmatpush2.msra.mxu0 0.0
    %223 = vmatprep.subr.mxu0 0.0
    %224 = vmatpush2.msra.mxu0 0.0
    %225 = vmatprep.subr.mxu0 0.0
    %226 = vmatpush2.msra.mxu0 0.0
    %227 = vmatprep.mubr.f32.mxu0 0.0
    %228 = vmatmul.mubr.f32.gmra.mxu0 %v152
    %v229 = vpop.f32.mrf.mxu0
    %v230 = vadd.f32 %v149, %v229
    %v231 = vpop.f32.mrf.mxu0
    %232 = vmatprep.mubr.f32.mxu0 0.0
    %233 = vmatmul.mubr.f32.gmra.mxu0 %v155
    %v234 = vpop.f32.mrf.mxu0
    %v235 = vadd.f32 %v149, %v234
    %v236 = vpop.f32.mrf.mxu0
    %237 = vmatprep.mubr.f32.mxu0 0.0
    %238 = vmatmul.mubr.f32.gmra.mxu0 %v158
    %v239 = vpop.f32.mrf.mxu0
    %v240 = vadd.f32 %v149, %v239
    %v241 = vpop.f32.mrf.mxu0
    %242 = vmatprep.mubr.f32.mxu0 0.0
    %243 = vmatmul.mubr.f32.gmra.mxu0 %v161
    %v244 = vpop.f32.mrf.mxu0
    %v245 = vadd.f32 %v149, %v244
    %v246 = vpop.f32.mrf.mxu0
    %247 = vdwg.mxu0
    %252 = vrot.lane.b32.xlu0 %v230, 96
    %v253 = vpop.permute.xlu0 %252
    %254 = vrot.lane.b32.xlu0 %v235, 96
    %v255 = vpop.permute.xlu0 %254
    %256 = vrot.lane.b32.xlu0 %v240, 96
    %v257 = vpop.permute.xlu0 %256
    %258 = vrot.lane.b32.xlu0 %v245, 96
    %v259 = vpop.permute.xlu0 %258
    %v264 = vmul.f32 %v230, %v253
    %v265 = vmul.f32 %v235, %v255
    %v266 = vmul.f32 %v240, %v257
    %v267 = vmul.f32 %v245, %v259
    %v269 = vsel %vm150, %v264, 0
    %v272 = vsel %vm150, %v265, 0
    %v275 = vsel %vm150, %v266, 0
    %v278 = vsel %vm150, %v267, 0
    %280 = vmatprep.subr.mxu0 0.0
    %281 = vmatpush1.msra.mxu0 0.0
    %282 = vmatprep.subr.mxu0 0.0
    %283 = vmatpush1.msra.mxu0 0.0
    %284 = vmatprep.subr.mxu0 0.0
    %285 = vmatpush1.msra.mxu0 0.0
    %286 = vmatprep.subr.mxu0 0.0
    %287 = vmatpush1.msra.mxu0 0.0
    %288 = vmatprep.subr.mxu0 0.0
    %289 = vmatpush1.msra.mxu0 0.0
    %290 = vmatprep.subr.mxu0 0.0
    %291 = vmatpush1.msra.mxu0 0.0
    %292 = vmatprep.subr.mxu0 0.0
    %293 = vmatpush1.msra.mxu0 0.0
    %294 = vmatprep.subr.mxu0 0.0
    %295 = vmatpush1.msra.mxu0 0.0
    %296 = vmatprep.subr.mxu0 0.0
    %297 = vmatpush1.msra.mxu0 0.0
    %298 = vmatprep.subr.mxu0 0.0
    %299 = vmatpush1.msra.mxu0 0.0
    %300 = vmatprep.subr.mxu0 0.0
    %301 = vmatpush1.msra.mxu0 0.0
    %302 = vmatprep.subr.mxu0 0.0
    %303 = vmatpush1.msra.mxu0 0.0
    %304 = vmatprep.subr.mxu0 0.0
    %305 = vmatpush1.msra.mxu0 %v18
    %306 = vmatprep.subr.mxu0 0.0
    %307 = vmatpush1.msra.mxu0 %v17
    %308 = vmatprep.subr.mxu0 0.0
    %309 = vmatpush1.msra.mxu0 %v16
    %310 = vmatprep.subr.mxu0 0.0
    %311 = vmatpush1.msra.mxu0 %v15
    %312 = vmatprep.subr.mxu0 0.0
    %313 = vmatpush2.msra.mxu0 0.0
    %314 = vmatprep.subr.mxu0 0.0
    %315 = vmatpush2.msra.mxu0 0.0
    %316 = vmatprep.subr.mxu0 0.0
    %317 = vmatpush2.msra.mxu0 0.0
    %318 = vmatprep.subr.mxu0 0.0
    %319 = vmatpush2.msra.mxu0 0.0
    %320 = vmatprep.subr.mxu0 0.0
    %321 = vmatpush2.msra.mxu0 0.0
    %322 = vmatprep.subr.mxu0 0.0
    %323 = vmatpush2.msra.mxu0 0.0
    %324 = vmatprep.subr.mxu0 0.0
    %325 = vmatpush2.msra.mxu0 0.0
    %326 = vmatprep.subr.mxu0 0.0
    %327 = vmatpush2.msra.mxu0 0.0
    %328 = vmatprep.subr.mxu0 0.0
    %329 = vmatpush2.msra.mxu0 0.0
    %330 = vmatprep.subr.mxu0 0.0
    %331 = vmatpush2.msra.mxu0 0.0
    %332 = vmatprep.subr.mxu0 0.0
    %333 = vmatpush2.msra.mxu0 0.0
    %334 = vmatprep.subr.mxu0 0.0
    %335 = vmatpush2.msra.mxu0 0.0
    %336 = vmatprep.subr.mxu0 0.0
    %337 = vmatpush2.msra.mxu0 0.0
    %338 = vmatprep.subr.mxu0 0.0
    %339 = vmatpush2.msra.mxu0 0.0
    %340 = vmatprep.subr.mxu0 0.0
    %341 = vmatpush2.msra.mxu0 0.0
    %342 = vmatprep.subr.mxu0 0.0
    %343 = vmatpush2.msra.mxu0 0.0
    %344 = vmatprep.mubr.f32.mxu0 0.0
    %345 = vmatmul.mubr.f32.gmra.mxu0 %v269
    %v346 = vpop.f32.mrf.mxu0
    %v347 = vadd.f32 0.0, %v346
    %v348 = vpop.f32.mrf.mxu0
    %349 = vmatprep.mubr.f32.mxu0 0.0
    %350 = vmatmul.mubr.f32.gmra.mxu0 %v272
    %v351 = vpop.f32.mrf.mxu0
    %v352 = vadd.f32 0.0, %v351
    %v353 = vpop.f32.mrf.mxu0
    %354 = vmatprep.mubr.f32.mxu0 0.0
    %355 = vmatmul.mubr.f32.gmra.mxu0 %v275
    %v356 = vpop.f32.mrf.mxu0
    %v357 = vadd.f32 0.0, %v356
    %v358 = vpop.f32.mrf.mxu0
    %359 = vmatprep.mubr.f32.mxu0 0.0
    %360 = vmatmul.mubr.f32.gmra.mxu0 %v278
    %v361 = vpop.f32.mrf.mxu0
    %v362 = vadd.f32 0.0, %v361
    %v363 = vpop.f32.mrf.mxu0
    %364 = vdwg.mxu0
    %v365 = vmul.f32 %v347, 0.5
    %v366 = vmul.f32 %v352, 0.5
    %v367 = vmul.f32 %v357, 0.5
    %v368 = vmul.f32 %v362, 0.5
    %v369 = vmul.f32 %v230, %v257
    %v370 = vmul.f32 %v235, %v259
    %v371 = vmul.f32 %v240, %v253
    %v372 = vmul.f32 %v245, %v255
    %v374 = vsel %vm150, %v369, 0
    %v377 = vsel %vm150, %v370, 0
    %v380 = vsel %vm150, %v371, 0
    %v383 = vsel %vm150, %v372, 0
    %385 = vmatprep.subr.mxu0 0.0
    %386 = vmatpush1.msra.mxu0 0.0
    %387 = vmatprep.subr.mxu0 0.0
    %388 = vmatpush1.msra.mxu0 0.0
    %389 = vmatprep.subr.mxu0 0.0
    %390 = vmatpush1.msra.mxu0 0.0
    %391 = vmatprep.subr.mxu0 0.0
    %392 = vmatpush1.msra.mxu0 0.0
    %393 = vmatprep.subr.mxu0 0.0
    %394 = vmatpush1.msra.mxu0 0.0
    %395 = vmatprep.subr.mxu0 0.0
    %396 = vmatpush1.msra.mxu0 0.0
    %397 = vmatprep.subr.mxu0 0.0
    %398 = vmatpush1.msra.mxu0 0.0
    %399 = vmatprep.subr.mxu0 0.0
    %400 = vmatpush1.msra.mxu0 0.0
    %401 = vmatprep.subr.mxu0 0.0
    %402 = vmatpush1.msra.mxu0 0.0
    %403 = vmatprep.subr.mxu0 0.0
    %404 = vmatpush1.msra.mxu0 0.0
    %405 = vmatprep.subr.mxu0 0.0
    %406 = vmatpush1.msra.mxu0 0.0
    %407 = vmatprep.subr.mxu0 0.0
    %408 = vmatpush1.msra.mxu0 0.0
    %409 = vmatprep.subr.mxu0 0.0
    %410 = vmatpush1.msra.mxu0 %v18
    %411 = vmatprep.subr.mxu0 0.0
    %412 = vmatpush1.msra.mxu0 %v17
    %413 = vmatprep.subr.mxu0 0.0
    %414 = vmatpush1.msra.mxu0 %v16
    %415 = vmatprep.subr.mxu0 0.0
    %416 = vmatpush1.msra.mxu0 %v15
    %417 = vmatprep.subr.mxu0 0.0
    %418 = vmatpush2.msra.mxu0 0.0
    %419 = vmatprep.subr.mxu0 0.0
    %420 = vmatpush2.msra.mxu0 0.0
    %421 = vmatprep.subr.mxu0 0.0
    %422 = vmatpush2.msra.mxu0 0.0
    %423 = vmatprep.subr.mxu0 0.0
    %424 = vmatpush2.msra.mxu0 0.0
    %425 = vmatprep.subr.mxu0 0.0
    %426 = vmatpush2.msra.mxu0 0.0
    %427 = vmatprep.subr.mxu0 0.0
    %428 = vmatpush2.msra.mxu0 0.0
    %429 = vmatprep.subr.mxu0 0.0
    %430 = vmatpush2.msra.mxu0 0.0
    %431 = vmatprep.subr.mxu0 0.0
    %432 = vmatpush2.msra.mxu0 0.0
    %433 = vmatprep.subr.mxu0 0.0
    %434 = vmatpush2.msra.mxu0 0.0
    %435 = vmatprep.subr.mxu0 0.0
    %436 = vmatpush2.msra.mxu0 0.0
    %437 = vmatprep.subr.mxu0 0.0
    %438 = vmatpush2.msra.mxu0 0.0
    %439 = vmatprep.subr.mxu0 0.0
    %440 = vmatpush2.msra.mxu0 0.0
    %441 = vmatprep.subr.mxu0 0.0
    %442 = vmatpush2.msra.mxu0 0.0
    %443 = vmatprep.subr.mxu0 0.0
    %444 = vmatpush2.msra.mxu0 0.0
    %445 = vmatprep.subr.mxu0 0.0
    %446 = vmatpush2.msra.mxu0 0.0
    %447 = vmatprep.subr.mxu0 0.0
    %448 = vmatpush2.msra.mxu0 0.0
    %449 = vmatprep.mubr.f32.mxu0 0.0
    %450 = vmatmul.mubr.f32.gmra.mxu0 %v374
    %v451 = vpop.f32.mrf.mxu0
    %v452 = vadd.f32 0.0, %v451
    %v453 = vpop.f32.mrf.mxu0
    %454 = vmatprep.mubr.f32.mxu0 0.0
    %455 = vmatmul.mubr.f32.gmra.mxu0 %v377
    %v456 = vpop.f32.mrf.mxu0
    %v457 = vadd.f32 0.0, %v456
    %v458 = vpop.f32.mrf.mxu0
    %459 = vmatprep.mubr.f32.mxu0 0.0
    %460 = vmatmul.mubr.f32.gmra.mxu0 %v380
    %v461 = vpop.f32.mrf.mxu0
    %v462 = vadd.f32 0.0, %v461
    %v463 = vpop.f32.mrf.mxu0
    %464 = vmatprep.mubr.f32.mxu0 0.0
    %465 = vmatmul.mubr.f32.gmra.mxu0 %v383
    %v466 = vpop.f32.mrf.mxu0
    %v467 = vadd.f32 0.0, %v466
    %v468 = vpop.f32.mrf.mxu0
    %469 = vdwg.mxu0
    %v470 = vmul.f32 %v452, 0.5
    %v471 = vmul.f32 %v457, 0.5
    %v472 = vmul.f32 %v462, 0.5
    %v473 = vmul.f32 %v467, 0.5
    %v474 = vmax.f32 %v365, %v470
    %v475 = vmax.f32 %v366, %v471
    %v476 = vmax.f32 %v367, %v472
    %v477 = vmax.f32 %v368, %v473
    %v478 = vsub.f32 %v365, %v474
    %v479 = vsub.f32 %v366, %v475
    %v480 = vsub.f32 %v367, %v476
    %v481 = vsub.f32 %v368, %v477
    %v482 = vmul.f32 %v478, 1.442695
    %v483 = vpow.pop %v482
    %v484 = vmul.f32 %v479, 1.442695
    %v485 = vpow.pop %v484
    %v486 = vmul.f32 %v480, 1.442695
    %v487 = vpow.pop %v486
    %v488 = vmul.f32 %v481, 1.442695
    %v489 = vpow.pop %v488
    %v490 = vsub.f32 %v470, %v474
    %v491 = vsub.f32 %v471, %v475
    %v492 = vsub.f32 %v472, %v476
    %v493 = vsub.f32 %v473, %v477
    %v494 = vmul.f32 %v490, 1.442695
    %v495 = vpow.pop %v494
    %v496 = vmul.f32 %v491, 1.442695
    %v497 = vpow.pop %v496
    %v498 = vmul.f32 %v492, 1.442695
    %v499 = vpow.pop %v498
    %v500 = vmul.f32 %v493, 1.442695
    %v501 = vpow.pop %v500
    %v502 = vadd.f32 %v483, %v495
    %v503 = vadd.f32 %v485, %v497
    %v504 = vadd.f32 %v487, %v499
    %v505 = vadd.f32 %v489, %v501
    %v506 = vrcp.pop %v502
    %v507 = vrcp.pop %v503
    %v508 = vrcp.pop %v504
    %v509 = vrcp.pop %v505
    %v510 = vmul.f32 %v483, %v506
    %v511 = vmul.f32 %v485, %v507
    %v512 = vmul.f32 %v487, %v508
    %v513 = vmul.f32 %v489, %v509
    %vm514 = vcmask 64512
    %v516 = vsel %vm514, %v510, 0
    %v519 = vsel %vm514, %v511, 0
    %v522 = vsel %vm514, %v512, 0
    %v525 = vsel %vm514, %v513, 0
    %527 = vmatprep.subr.mxu0 0.0
    %528 = vmatpush1.msra.mxu0 0.0
    %529 = vmatprep.subr.mxu0 0.0
    %530 = vmatpush1.msra.mxu0 0.0
    %531 = vmatprep.subr.mxu0 0.0
    %532 = vmatpush1.msra.mxu0 0.0
    %533 = vmatprep.subr.mxu0 0.0
    %534 = vmatpush1.msra.mxu0 0.0
    %535 = vmatprep.subr.mxu0 0.0
    %536 = vmatpush1.msra.mxu0 0.0
    %537 = vmatprep.subr.mxu0 0.0
    %538 = vmatpush1.msra.mxu0 0.0
    %539 = vmatprep.subr.mxu0 0.0
    %540 = vmatpush1.msra.mxu0 0.0
    %541 = vmatprep.subr.mxu0 0.0
    %542 = vmatpush1.msra.mxu0 0.0
    %543 = vmatprep.subr.mxu0 0.0
    %544 = vmatpush1.msra.mxu0 0.0
    %545 = vmatprep.subr.mxu0 0.0
    %546 = vmatpush1.msra.mxu0 0.0
    %547 = vmatprep.subr.mxu0 0.0
    %548 = vmatpush1.msra.mxu0 0.0
    %549 = vmatprep.subr.mxu0 0.0
    %550 = vmatpush1.msra.mxu0 0.0
    %551 = vmatprep.subr.mxu0 0.0
    %552 = vmatpush1.msra.mxu0 0.0
    %553 = vmatprep.subr.mxu0 0.0
    %554 = vmatpush1.msra.mxu0 0.0
    %555 = vmatprep.subr.mxu0 0.0
    %556 = vmatpush1.msra.mxu0 0.0
    %557 = vmatprep.subr.mxu0 0.0
    %558 = vmatpush1.msra.mxu0 %v19
    %559 = vmatprep.subr.mxu0 0.0
    %560 = vmatpush2.msra.mxu0 0.0
    %561 = vmatprep.subr.mxu0 0.0
    %562 = vmatpush2.msra.mxu0 0.0
    %563 = vmatprep.subr.mxu0 0.0
    %564 = vmatpush2.msra.mxu0 0.0
    %565 = vmatprep.subr.mxu0 0.0
    %566 = vmatpush2.msra.mxu0 0.0
    %567 = vmatprep.subr.mxu0 0.0
    %568 = vmatpush2.msra.mxu0 0.0
    %569 = vmatprep.subr.mxu0 0.0
    %570 = vmatpush2.msra.mxu0 0.0
    %571 = vmatprep.subr.mxu0 0.0
    %572 = vmatpush2.msra.mxu0 0.0
    %573 = vmatprep.subr.mxu0 0.0
    %574 = vmatpush2.msra.mxu0 0.0
    %575 = vmatprep.subr.mxu0 0.0
    %576 = vmatpush2.msra.mxu0 0.0
    %577 = vmatprep.subr.mxu0 0.0
    %578 = vmatpush2.msra.mxu0 0.0
    %579 = vmatprep.subr.mxu0 0.0
    %580 = vmatpush2.msra.mxu0 0.0
    %581 = vmatprep.subr.mxu0 0.0
    %582 = vmatpush2.msra.mxu0 0.0
    %583 = vmatprep.subr.mxu0 0.0
    %584 = vmatpush2.msra.mxu0 0.0
    %585 = vmatprep.subr.mxu0 0.0
    %586 = vmatpush2.msra.mxu0 0.0
    %587 = vmatprep.subr.mxu0 0.0
    %588 = vmatpush2.msra.mxu0 0.0
    %589 = vmatprep.subr.mxu0 0.0
    %590 = vmatpush2.msra.mxu0 0.0
    %591 = vmatprep.mubr.f32.mxu0 0.0
    %592 = vmatmul.mubr.f32.gmra.mxu0 %v516
    %v593 = vpop.f32.mrf.mxu0
    %v594 = vadd.f32 0.0, %v593
    %v595 = vpop.f32.mrf.mxu0
    %596 = vmatprep.mubr.f32.mxu0 0.0
    %597 = vmatmul.mubr.f32.gmra.mxu0 %v519
    %v598 = vpop.f32.mrf.mxu0
    %v599 = vadd.f32 0.0, %v598
    %v600 = vpop.f32.mrf.mxu0
    %601 = vmatprep.mubr.f32.mxu0 0.0
    %602 = vmatmul.mubr.f32.gmra.mxu0 %v522
    %v603 = vpop.f32.mrf.mxu0
    %v604 = vadd.f32 0.0, %v603
    %v605 = vpop.f32.mrf.mxu0
    %606 = vmatprep.mubr.f32.mxu0 0.0
    %607 = vmatmul.mubr.f32.gmra.mxu0 %v525
    %v608 = vpop.f32.mrf.mxu0
    %v609 = vadd.f32 0.0, %v608
    %v610 = vpop.f32.mrf.mxu0
    %611 = vdwg.mxu0
    %612 = vrot.lane.b32.xlu0 %v230, 64
    %v613 = vpop.permute.xlu0 %612
    %614 = vrot.lane.b32.xlu0 %v235, 64
    %v615 = vpop.permute.xlu0 %614
    %616 = vrot.lane.b32.xlu0 %v240, 64
    %v617 = vpop.permute.xlu0 %616
    %618 = vrot.lane.b32.xlu0 %v245, 64
    %v619 = vpop.permute.xlu0 %618
    %v624 = vmul.f32 %v594, %v613
    %v625 = vmul.f32 %v599, %v615
    %v626 = vmul.f32 %v604, %v617
    %v627 = vmul.f32 %v609, %v619
    %v628 = vmul.f32 %v495, %v506
    %v629 = vmul.f32 %v497, %v507
    %v630 = vmul.f32 %v499, %v508
    %v631 = vmul.f32 %v501, %v509
    %v633 = vsel %vm514, %v628, 0
    %v636 = vsel %vm514, %v629, 0
    %v639 = vsel %vm514, %v630, 0
    %v642 = vsel %vm514, %v631, 0
    %644 = vmatprep.subr.mxu0 0.0
    %645 = vmatpush1.msra.mxu0 0.0
    %646 = vmatprep.subr.mxu0 0.0
    %647 = vmatpush1.msra.mxu0 0.0
    %648 = vmatprep.subr.mxu0 0.0
    %649 = vmatpush1.msra.mxu0 0.0
    %650 = vmatprep.subr.mxu0 0.0
    %651 = vmatpush1.msra.mxu0 0.0
    %652 = vmatprep.subr.mxu0 0.0
    %653 = vmatpush1.msra.mxu0 0.0
    %654 = vmatprep.subr.mxu0 0.0
    %655 = vmatpush1.msra.mxu0 0.0
    %656 = vmatprep.subr.mxu0 0.0
    %657 = vmatpush1.msra.mxu0 0.0
    %658 = vmatprep.subr.mxu0 0.0
    %659 = vmatpush1.msra.mxu0 0.0
    %660 = vmatprep.subr.mxu0 0.0
    %661 = vmatpush1.msra.mxu0 0.0
    %662 = vmatprep.subr.mxu0 0.0
    %663 = vmatpush1.msra.mxu0 0.0
    %664 = vmatprep.subr.mxu0 0.0
    %665 = vmatpush1.msra.mxu0 0.0
    %666 = vmatprep.subr.mxu0 0.0
    %667 = vmatpush1.msra.mxu0 0.0
    %668 = vmatprep.subr.mxu0 0.0
    %669 = vmatpush1.msra.mxu0 0.0
    %670 = vmatprep.subr.mxu0 0.0
    %671 = vmatpush1.msra.mxu0 0.0
    %672 = vmatprep.subr.mxu0 0.0
    %673 = vmatpush1.msra.mxu0 0.0
    %674 = vmatprep.subr.mxu0 0.0
    %675 = vmatpush1.msra.mxu0 %v19
    %676 = vmatprep.subr.mxu0 0.0
    %677 = vmatpush2.msra.mxu0 0.0
    %678 = vmatprep.subr.mxu0 0.0
    %679 = vmatpush2.msra.mxu0 0.0
    %680 = vmatprep.subr.mxu0 0.0
    %681 = vmatpush2.msra.mxu0 0.0
    %682 = vmatprep.subr.mxu0 0.0
    %683 = vmatpush2.msra.mxu0 0.0
    %684 = vmatprep.subr.mxu0 0.0
    %685 = vmatpush2.msra.mxu0 0.0
    %686 = vmatprep.subr.mxu0 0.0
    %687 = vmatpush2.msra.mxu0 0.0
    %688 = vmatprep.subr.mxu0 0.0
    %689 = vmatpush2.msra.mxu0 0.0
    %690 = vmatprep.subr.mxu0 0.0
    %691 = vmatpush2.msra.mxu0 0.0
    %692 = vmatprep.subr.mxu0 0.0
    %693 = vmatpush2.msra.mxu0 0.0
    %694 = vmatprep.subr.mxu0 0.0
    %695 = vmatpush2.msra.mxu0 0.0
    %696 = vmatprep.subr.mxu0 0.0
    %697 = vmatpush2.msra.mxu0 0.0
    %698 = vmatprep.subr.mxu0 0.0
    %699 = vmatpush2.msra.mxu0 0.0
    %700 = vmatprep.subr.mxu0 0.0
    %701 = vmatpush2.msra.mxu0 0.0
    %702 = vmatprep.subr.mxu0 0.0
    %703 = vmatpush2.msra.mxu0 0.0
    %704 = vmatprep.subr.mxu0 0.0
    %705 = vmatpush2.msra.mxu0 0.0
    %706 = vmatprep.subr.mxu0 0.0
    %707 = vmatpush2.msra.mxu0 0.0
    %708 = vmatprep.mubr.f32.mxu0 0.0
    %709 = vmatmul.mubr.f32.gmra.mxu0 %v633
    %v710 = vpop.f32.mrf.mxu0
    %v711 = vadd.f32 0.0, %v710
    %v712 = vpop.f32.mrf.mxu0
    %713 = vmatprep.mubr.f32.mxu0 0.0
    %714 = vmatmul.mubr.f32.gmra.mxu0 %v636
    %v715 = vpop.f32.mrf.mxu0
    %v716 = vadd.f32 0.0, %v715
    %v717 = vpop.f32.mrf.mxu0
    %718 = vmatprep.mubr.f32.mxu0 0.0
    %719 = vmatmul.mubr.f32.gmra.mxu0 %v639
    %v720 = vpop.f32.mrf.mxu0
    %v721 = vadd.f32 0.0, %v720
    %v722 = vpop.f32.mrf.mxu0
    %723 = vmatprep.mubr.f32.mxu0 0.0
    %724 = vmatmul.mubr.f32.gmra.mxu0 %v642
    %v725 = vpop.f32.mrf.mxu0
    %v726 = vadd.f32 0.0, %v725
    %v727 = vpop.f32.mrf.mxu0
    %728 = vdwg.mxu0
    %v729 = vmul.f32 %v711, %v617
    %v730 = vmul.f32 %v716, %v619
    %v731 = vmul.f32 %v721, %v613
    %v732 = vmul.f32 %v726, %v615
    %v733 = vadd.f32 %v624, %v729
    %v734 = vadd.f32 %v625, %v730
    %v735 = vadd.f32 %v626, %v731
    %v736 = vadd.f32 %v627, %v732
    %v737 = vld [vmem:[%s1 + $0x78] sm:$0xff]
    %v738 = vld [vmem:[%s1 + $0x80] sm:$0xff]
    %v739 = vld [vmem:[%s1 + $0x88] sm:$0xff]
    %v740 = vld [vmem:[%s1 + $0x90] sm:$0xff]
    %v741 = vld [vmem:[%s2 + $0x30] sm:$0x1]
    %v742 = vlaneseq
    %v743 = vshrl.u32 %v742, 7
    %v744 = vsub.s32 0, %v743
    %v745 = vrot.slane %v741, %v744
    %v747 = vsel %vm150, %v733, 0
    %v750 = vsel %vm150, %v734, 0
    %v753 = vsel %vm150, %v735, 0
    %v756 = vsel %vm150, %v736, 0
    %758 = vmatprep.subr.mxu0 0.0
    %759 = vmatpush1.msra.mxu0 0.0
    %760 = vmatprep.subr.mxu0 0.0
    %761 = vmatpush1.msra.mxu0 0.0
    %762 = vmatprep.subr.mxu0 0.0
    %763 = vmatpush1.msra.mxu0 0.0
    %764 = vmatprep.subr.mxu0 0.0
    %765 = vmatpush1.msra.mxu0 0.0
    %766 = vmatprep.subr.mxu0 0.0
    %767 = vmatpush1.msra.mxu0 0.0
    %768 = vmatprep.subr.mxu0 0.0
    %769 = vmatpush1.msra.mxu0 0.0
    %770 = vmatprep.subr.mxu0 0.0
    %771 = vmatpush1.msra.mxu0 0.0
    %772 = vmatprep.subr.mxu0 0.0
    %773 = vmatpush1.msra.mxu0 0.0
    %774 = vmatprep.subr.mxu0 0.0
    %775 = vmatpush1.msra.mxu0 0.0
    %776 = vmatprep.subr.mxu0 0.0
    %777 = vmatpush1.msra.mxu0 0.0
    %778 = vmatprep.subr.mxu0 0.0
    %779 = vmatpush1.msra.mxu0 0.0
    %780 = vmatprep.subr.mxu0 0.0
    %781 = vmatpush1.msra.mxu0 0.0
    %782 = vmatprep.subr.mxu0 0.0
    %783 = vmatpush1.msra.mxu0 %v740
    %784 = vmatprep.subr.mxu0 0.0
    %785 = vmatpush1.msra.mxu0 %v739
    %786 = vmatprep.subr.mxu0 0.0
    %787 = vmatpush1.msra.mxu0 %v738
    %788 = vmatprep.subr.mxu0 0.0
    %789 = vmatpush1.msra.mxu0 %v737
    %790 = vmatprep.subr.mxu0 0.0
    %791 = vmatpush2.msra.mxu0 0.0
    %792 = vmatprep.subr.mxu0 0.0
    %793 = vmatpush2.msra.mxu0 0.0
    %794 = vmatprep.subr.mxu0 0.0
    %795 = vmatpush2.msra.mxu0 0.0
    %796 = vmatprep.subr.mxu0 0.0
    %797 = vmatpush2.msra.mxu0 0.0
    %798 = vmatprep.subr.mxu0 0.0
    %799 = vmatpush2.msra.mxu0 0.0
    %800 = vmatprep.subr.mxu0 0.0
    %801 = vmatpush2.msra.mxu0 0.0
    %802 = vmatprep.subr.mxu0 0.0
    %803 = vmatpush2.msra.mxu0 0.0
    %804 = vmatprep.subr.mxu0 0.0
    %805 = vmatpush2.msra.mxu0 0.0
    %806 = vmatprep.subr.mxu0 0.0
    %807 = vmatpush2.msra.mxu0 0.0
    %808 = vmatprep.subr.mxu0 0.0
    %809 = vmatpush2.msra.mxu0 0.0
    %810 = vmatprep.subr.mxu0 0.0
    %811 = vmatpush2.msra.mxu0 0.0
    %812 = vmatprep.subr.mxu0 0.0
    %813 = vmatpush2.msra.mxu0 0.0
    %814 = vmatprep.subr.mxu0 0.0
    %815 = vmatpush2.msra.mxu0 0.0
    %816 = vmatprep.subr.mxu0 0.0
    %817 = vmatpush2.msra.mxu0 0.0
    %818 = vmatprep.subr.mxu0 0.0
    %819 = vmatpush2.msra.mxu0 0.0
    %820 = vmatprep.subr.mxu0 0.0
    %821 = vmatpush2.msra.mxu0 0.0
    %822 = vmatprep.mubr.f32.mxu0 0.0
    %823 = vmatmul.mubr.f32.gmra.mxu0 %v747
    %v824 = vpop.f32.mrf.mxu0
    %v825 = vadd.f32 %v745, %v824
    %v826 = vpop.f32.mrf.mxu0
    %827 = vmatprep.mubr.f32.mxu0 0.0
    %828 = vmatmul.mubr.f32.gmra.mxu0 %v750
    %v829 = vpop.f32.mrf.mxu0
    %v830 = vadd.f32 %v745, %v829
    %v831 = vpop.f32.mrf.mxu0
    %832 = vmatprep.mubr.f32.mxu0 0.0
    %833 = vmatmul.mubr.f32.gmra.mxu0 %v753
    %v834 = vpop.f32.mrf.mxu0
    %v835 = vadd.f32 %v745, %v834
    %v836 = vpop.f32.mrf.mxu0
    %837 = vmatprep.mubr.f32.mxu0 0.0
    %838 = vmatmul.mubr.f32.gmra.mxu0 %v756
    %v839 = vpop.f32.mrf.mxu0
    %v840 = vadd.f32 %v745, %v839
    %v841 = vpop.f32.mrf.mxu0
    %842 = vdwg.mxu0
    %v843 = vadd.f32 %v137, %v825
    %v844 = vadd.f32 %v138, %v830
    %v845 = vadd.f32 %v139, %v835
    %v846 = vadd.f32 %v140, %v840
    %v847 = vld [vmem:[%s2 + $0x38] sm:$0x1]
    %v848 = vld [vmem:[%s2 + $0x40] sm:$0x1]
    %v849 = vsel %vm150, %v843, 0.0
    %850 = vadd.xlane.f32.xlu0 %v849
    %v851 = vpop.xlane.xlu0 %850
    %v852 = vsel %vm150, %v844, 0.0
    %853 = vadd.xlane.f32.xlu0 %v852
    %v854 = vpop.xlane.xlu0 %853
    %v855 = vsel %vm150, %v845, 0.0
    %856 = vadd.xlane.f32.xlu0 %v855
    %v857 = vpop.xlane.xlu0 %856
    %v858 = vsel %vm150, %v846, 0.0
    %859 = vadd.xlane.f32.xlu0 %v858
    %v860 = vpop.xlane.xlu0 %859
    %v861 = vrcp.pop 32.0
    %v862 = vmul.f32 %v851, %v861
    %v863 = vmul.f32 %v854, %v861
    %v864 = vmul.f32 %v857, %v861
    %v865 = vmul.f32 %v860, %v861
    %v866 = vsub.f32 %v843, %v862
    %v867 = vsub.f32 %v844, %v863
    %v868 = vsub.f32 %v845, %v864
    %v869 = vsub.f32 %v846, %v865
    %v870 = vmul.f32 %v866, %v866
    %v871 = vmul.f32 %v867, %v867
    %v872 = vmul.f32 %v868, %v868
    %v873 = vmul.f32 %v869, %v869
    %v874 = vsel %vm150, %v870, 0.0
    %875 = vadd.xlane.f32.xlu0 %v874
    %v876 = vpop.xlane.xlu0 %875
    %v877 = vsel %vm150, %v871, 0.0
    %878 = vadd.xlane.f32.xlu0 %v877
    %v879 = vpop.xlane.xlu0 %878
    %v880 = vsel %vm150, %v872, 0.0
    %881 = vadd.xlane.f32.xlu0 %v880
    %v882 = vpop.xlane.xlu0 %881
    %v883 = vsel %vm150, %v873, 0.0
    %884 = vadd.xlane.f32.xlu0 %v883
    %v885 = vpop.xlane.xlu0 %884
    %v886 = vmul.f32 %v876, %v861
    %v887 = vmul.f32 %v879, %v861
    %v888 = vmul.f32 %v882, %v861
    %v889 = vmul.f32 %v885, %v861
    %v890 = vadd.f32 %v886, 1e-05
    %v891 = vadd.f32 %v887, 1e-05
    %v892 = vadd.f32 %v888, 1e-05
    %v893 = vadd.f32 %v889, 1e-05
    %v894 = vrsqrt.pop %v890
    %v895 = vrsqrt.pop %v891
    %v896 = vrsqrt.pop %v892
    %v897 = vrsqrt.pop %v893
    %v898 = vmul.f32 %v866, %v894
    %v899 = vmul.f32 %v867, %v895
    %v900 = vmul.f32 %v868, %v896
    %v901 = vmul.f32 %v869, %v897
    %v902 = vlaneseq
    %v903 = vshrl.u32 %v902, 7
    %v904 = vsub.s32 0, %v903
    %v905 = vrot.slane %v847, %v904
    %v906 = vmul.f32 %v898, %v905
    %v907 = vmul.f32 %v899, %v905
    %v908 = vmul.f32 %v900, %v905
    %v909 = vmul.f32 %v901, %v905
    %v910 = vlaneseq
    %v911 = vshrl.u32 %v910, 7
    %v912 = vsub.s32 0, %v911
    %v913 = vrot.slane %v848, %v912
    %v914 = vadd.f32 %v906, %v913
    %v915 = vadd.f32 %v907, %v913
    %v916 = vadd.f32 %v908, %v913
    %v917 = vadd.f32 %v909, %v913
    %v918 = vld [vmem:[%s1 + $0x98] sm:$0xff]
    %v919 = vld [vmem:[%s1 + $0xa0] sm:$0xff]
    %v920 = vld [vmem:[%s1 + $0xa8] sm:$0xff]
    %v921 = vld [vmem:[%s1 + $0xb0] sm:$0xff]
    %v922 = vld [vmem:[%s2 + $0x48] sm:$0x1]
    %v923 = vlaneseq
    %v924 = vshrl.u32 %v923, 7
    %v925 = vsub.s32 0, %v924
    %v926 = vrot.slane %v922, %v925
    %v928 = vsel %vm150, %v914, 0
    %v931 = vsel %vm150, %v915, 0
    %v934 = vsel %vm150, %v916, 0
    %v937 = vsel %vm150, %v917, 0
    %939 = vmatprep.subr.mxu0 0.0
    %940 = vmatpush1.msra.mxu0 0.0
    %941 = vmatprep.subr.mxu0 0.0
    %942 = vmatpush1.msra.mxu0 0.0
    %943 = vmatprep.subr.mxu0 0.0
    %944 = vmatpush1.msra.mxu0 0.0
    %945 = vmatprep.subr.mxu0 0.0
    %946 = vmatpush1.msra.mxu0 0.0
    %947 = vmatprep.subr.mxu0 0.0
    %948 = vmatpush1.msra.mxu0 0.0
    %949 = vmatprep.subr.mxu0 0.0
    %950 = vmatpush1.msra.mxu0 0.0
    %951 = vmatprep.subr.mxu0 0.0
    %952 = vmatpush1.msra.mxu0 0.0
    %953 = vmatprep.subr.mxu0 0.0
    %954 = vmatpush1.msra.mxu0 0.0
    %955 = vmatprep.subr.mxu0 0.0
    %956 = vmatpush1.msra.mxu0 0.0
    %957 = vmatprep.subr.mxu0 0.0
    %958 = vmatpush1.msra.mxu0 0.0
    %959 = vmatprep.subr.mxu0 0.0
    %960 = vmatpush1.msra.mxu0 0.0
    %961 = vmatprep.subr.mxu0 0.0
    %962 = vmatpush1.msra.mxu0 0.0
    %963 = vmatprep.subr.mxu0 0.0
    %964 = vmatpush1.msra.mxu0 %v921
    %965 = vmatprep.subr.mxu0 0.0
    %966 = vmatpush1.msra.mxu0 %v920
    %967 = vmatprep.subr.mxu0 0.0
    %968 = vmatpush1.msra.mxu0 %v919
    %969 = vmatprep.subr.mxu0 0.0
    %970 = vmatpush1.msra.mxu0 %v918
    %971 = vmatprep.subr.mxu0 0.0
    %972 = vmatpush2.msra.mxu0 0.0
    %973 = vmatprep.subr.mxu0 0.0
    %974 = vmatpush2.msra.mxu0 0.0
    %975 = vmatprep.subr.mxu0 0.0
    %976 = vmatpush2.msra.mxu0 0.0
    %977 = vmatprep.subr.mxu0 0.0
    %978 = vmatpush2.msra.mxu0 0.0
    %979 = vmatprep.subr.mxu0 0.0
    %980 = vmatpush2.msra.mxu0 0.0
    %981 = vmatprep.subr.mxu0 0.0
    %982 = vmatpush2.msra.mxu0 0.0
    %983 = vmatprep.subr.mxu0 0.0
    %984 = vmatpush2.msra.mxu0 0.0
    %985 = vmatprep.subr.mxu0 0.0
    %986 = vmatpush2.msra.mxu0 0.0
    %987 = vmatprep.subr.mxu0 0.0
    %988 = vmatpush2.msra.mxu0 0.0
    %989 = vmatprep.subr.mxu0 0.0
    %990 = vmatpush2.msra.mxu0 0.0
    %991 = vmatprep.subr.mxu0 0.0
    %992 = vmatpush2.msra.mxu0 0.0
    %993 = vmatprep.subr.mxu0 0.0
    %994 = vmatpush2.msra.mxu0 0.0
    %995 = vmatprep.subr.mxu0 0.0
    %996 = vmatpush2.msra.mxu0 0.0
    %997 = vmatprep.subr.mxu0 0.0
    %998 = vmatpush2.msra.mxu0 0.0
    %999 = vmatprep.subr.mxu0 0.0
    %1000 = vmatpush2.msra.mxu0 0.0
    %1001 = vmatprep.subr.mxu0 0.0
    %1002 = vmatpush2.msra.mxu0 0.0
    %1003 = vmatprep.mubr.f32.mxu0 0.0
    %1004 = vmatmul.mubr.f32.gmra.mxu0 %v928
    %v1005 = vpop.f32.mrf.mxu0
    %v1006 = vadd.f32 %v926, %v1005
    %v1007 = vpop.f32.mrf.mxu0
    %1008 = vmatprep.mubr.f32.mxu0 0.0
    %1009 = vmatmul.mubr.f32.gmra.mxu0 %v931
    %v1010 = vpop.f32.mrf.mxu0
    %v1011 = vadd.f32 %v926, %v1010
    %v1012 = vpop.f32.mrf.mxu0
    %1013 = vmatprep.mubr.f32.mxu0 0.0
    %1014 = vmatmul.mubr.f32.gmra.mxu0 %v934
    %v1015 = vpop.f32.mrf.mxu0
    %v1016 = vadd.f32 %v926, %v1015
    %v1017 = vpop.f32.mrf.mxu0
    %1018 = vmatprep.mubr.f32.mxu0 0.0
    %1019 = vmatmul.mubr.f32.gmra.mxu0 %v937
    %v1020 = vpop.f32.mrf.mxu0
    %v1021 = vadd.f32 %v926, %v1020
    %v1022 = vpop.f32.mrf.mxu0
    %1023 = vdwg.mxu0
    %v1024 = vmax.f32 %v1006, 0.0
    %v1025 = vmax.f32 %v1011, 0.0
    %v1026 = vmax.f32 %v1016, 0.0
    %v1027 = vmax.f32 %v1021, 0.0
    %v1028 = vld [vmem:[%s1 + $0xb8] sm:$0xff]
    %v1029 = vld [vmem:[%s1 + $0xc0] sm:$0xff]
    %v1030 = vld [vmem:[%s1 + $0xc8] sm:$0xff]
    %v1031 = vld [vmem:[%s1 + $0xd0] sm:$0xff]
    %v1032 = vld [vmem:[%s1 + $0xd8] sm:$0xff]
    %v1033 = vld [vmem:[%s1 + $0xe0] sm:$0xff]
    %v1034 = vld [vmem:[%s1 + $0xe8] sm:$0xff]
    %v1035 = vld [vmem:[%s1 + $0xf0] sm:$0xff]
    %v1036 = vld [vmem:[%s1 + $0xf8] sm:$0xff]
    %v1037 = vld [vmem:[%s1 + $0x100] sm:$0xff]
    %v1038 = vld [vmem:[%s1 + $0x108] sm:$0xff]
    %v1039 = vld [vmem:[%s1 + $0x110] sm:$0xff]
    %v1040 = vld [vmem:[%s1 + $0x118] sm:$0xff]
    %v1041 = vld [vmem:[%s1 + $0x120] sm:$0xff]
    %v1042 = vld [vmem:[%s1 + $0x128] sm:$0xff]
    %v1043 = vld [vmem:[%s1 + $0x130] sm:$0xff]
    %v1044 = vld [vmem:[%s2 + $0x50] sm:$0x1]
    %v1045 = vlaneseq
    %v1046 = vshrl.u32 %v1045, 7
    %v1047 = vsub.s32 0, %v1046
    %v1048 = vrot.slane %v1044, %v1047
    %1049 = vmatprep.subr.mxu0 0.0
    %1050 = vmatpush1.msra.mxu0 %v1043
    %1051 = vmatprep.subr.mxu0 0.0
    %1052 = vmatpush1.msra.mxu0 %v1042
    %1053 = vmatprep.subr.mxu0 0.0
    %1054 = vmatpush1.msra.mxu0 %v1041
    %1055 = vmatprep.subr.mxu0 0.0
    %1056 = vmatpush1.msra.mxu0 %v1040
    %1057 = vmatprep.subr.mxu0 0.0
    %1058 = vmatpush1.msra.mxu0 %v1039
    %1059 = vmatprep.subr.mxu0 0.0
    %1060 = vmatpush1.msra.mxu0 %v1038
    %1061 = vmatprep.subr.mxu0 0.0
    %1062 = vmatpush1.msra.mxu0 %v1037
    %1063 = vmatprep.subr.mxu0 0.0
    %1064 = vmatpush1.msra.mxu0 %v1036
    %1065 = vmatprep.subr.mxu0 0.0
    %1066 = vmatpush1.msra.mxu0 %v1035
    %1067 = vmatprep.subr.mxu0 0.0
    %1068 = vmatpush1.msra.mxu0 %v1034
    %1069 = vmatprep.subr.mxu0 0.0
    %1070 = vmatpush1.msra.mxu0 %v1033
    %1071 = vmatprep.subr.mxu0 0.0
    %1072 = vmatpush1.msra.mxu0 %v1032
    %1073 = vmatprep.subr.mxu0 0.0
    %1074 = vmatpush1.msra.mxu0 %v1031
    %1075 = vmatprep.subr.mxu0 0.0
    %1076 = vmatpush1.msra.mxu0 %v1030
    %1077 = vmatprep.subr.mxu0 0.0
    %1078 = vmatpush1.msra.mxu0 %v1029
    %1079 = vmatprep.subr.mxu0 0.0
    %1080 = vmatpush1.msra.mxu0 %v1028
    %1081 = vmatprep.subr.mxu0 0.0
    %1082 = vmatpush2.msra.mxu0 0.0
    %1083 = vmatprep.subr.mxu0 0.0
    %1084 = vmatpush2.msra.mxu0 0.0
    %1085 = vmatprep.subr.mxu0 0.0
    %1086 = vmatpush2.msra.mxu0 0.0
    %1087 = vmatprep.subr.mxu0 0.0
    %1088 = vmatpush2.msra.mxu0 0.0
    %1089 = vmatprep.subr.mxu0 0.0
    %1090 = vmatpush2.msra.mxu0 0.0
    %1091 = vmatprep.subr.mxu0 0.0
    %1092 = vmatpush2.msra.mxu0 0.0
    %1093 = vmatprep.subr.mxu0 0.0
    %1094 = vmatpush2.msra.mxu0 0.0
    %1095 = vmatprep.subr.mxu0 0.0
    %1096 = vmatpush2.msra.mxu0 0.0
    %1097 = vmatprep.subr.mxu0 0.0
    %1098 = vmatpush2.msra.mxu0 0.0
    %1099 = vmatprep.subr.mxu0 0.0
    %1100 = vmatpush2.msra.mxu0 0.0
    %1101 = vmatprep.subr.mxu0 0.0
    %1102 = vmatpush2.msra.mxu0 0.0
    %1103 = vmatprep.subr.mxu0 0.0
    %1104 = vmatpush2.msra.mxu0 0.0
    %1105 = vmatprep.subr.mxu0 0.0
    %1106 = vmatpush2.msra.mxu0 0.0
    %1107 = vmatprep.subr.mxu0 0.0
    %1108 = vmatpush2.msra.mxu0 0.0
    %1109 = vmatprep.subr.mxu0 0.0
    %1110 = vmatpush2.msra.mxu0 0.0
    %1111 = vmatprep.subr.mxu0 0.0
    %1112 = vmatpush2.msra.mxu0 0.0
    %1113 = vmatprep.mubr.f32.mxu0 0.0
    %1114 = vmatmul.mubr.f32.gmra.mxu0 %v1024
    %v1115 = vpop.f32.mrf.mxu0
    %v1116 = vadd.f32 %v1048, %v1115
    %v1117 = vpop.f32.mrf.mxu0
    %1118 = vmatprep.mubr.f32.mxu0 0.0
    %1119 = vmatmul.mubr.f32.gmra.mxu0 %v1025
    %v1120 = vpop.f32.mrf.mxu0
    %v1121 = vadd.f32 %v1048, %v1120
    %v1122 = vpop.f32.mrf.mxu0
    %1123 = vmatprep.mubr.f32.mxu0 0.0
    %1124 = vmatmul.mubr.f32.gmra.mxu0 %v1026
    %v1125 = vpop.f32.mrf.mxu0
    %v1126 = vadd.f32 %v1048, %v1125
    %v1127 = vpop.f32.mrf.mxu0
    %1128 = vmatprep.mubr.f32.mxu0 0.0
    %1129 = vmatmul.mubr.f32.gmra.mxu0 %v1027
    %v1130 = vpop.f32.mrf.mxu0
    %v1131 = vadd.f32 %v1048, %v1130
    %v1132 = vpop.f32.mrf.mxu0
    %1133 = vdwg.mxu0
    %v1134 = vadd.f32 %v914, %v1116
    %v1135 = vadd.f32 %v915, %v1121
    %v1136 = vadd.f32 %v916, %v1126
    %v1137 = vadd.f32 %v917, %v1131
    %v1138 = vld [vmem:[%s2 + $0x58] sm:$0x1]
    %v1139 = vld [vmem:[%s2 + $0x60] sm:$0x1]
    %v1140 = vsel %vm150, %v1134, 0.0
    %1141 = vadd.xlane.f32.xlu0 %v1140
    %v1142 = vpop.xlane.xlu0 %1141
    %v1143 = vsel %vm150, %v1135, 0.0
    %1144 = vadd.xlane.f32.xlu0 %v1143
    %v1145 = vpop.xlane.xlu0 %1144
    %v1146 = vsel %vm150, %v1136, 0.0
    %1147 = vadd.xlane.f32.xlu0 %v1146
    %v1148 = vpop.xlane.xlu0 %1147
    %v1149 = vsel %vm150, %v1137, 0.0
    %1150 = vadd.xlane.f32.xlu0 %v1149
    %v1151 = vpop.xlane.xlu0 %1150
    %v1152 = vmul.f32 %v1142, %v861
    %v1153 = vmul.f32 %v1145, %v861
    %v1154 = vmul.f32 %v1148, %v861
    %v1155 = vmul.f32 %v1151, %v861
    %v1156 = vsub.f32 %v1134, %v1152
    %v1157 = vsub.f32 %v1135, %v1153
    %v1158 = vsub.f32 %v1136, %v1154
    %v1159 = vsub.f32 %v1137, %v1155
    %v1160 = vmul.f32 %v1156, %v1156
    %v1161 = vmul.f32 %v1157, %v1157
    %v1162 = vmul.f32 %v1158, %v1158
    %v1163 = vmul.f32 %v1159, %v1159
    %v1164 = vsel %vm150, %v1160, 0.0
    %1165 = vadd.xlane.f32.xlu0 %v1164
    %v1166 = vpop.xlane.xlu0 %1165
    %v1167 = vsel %vm150, %v1161, 0.0
    %1168 = vadd.xlane.f32.xlu0 %v1167
    %v1169 = vpop.xlane.xlu0 %1168
    %v1170 = vsel %vm150, %v1162, 0.0
    %1171 = vadd.xlane.f32.xlu0 %v1170
    %v1172 = vpop.xlane.xlu0 %1171
    %v1173 = vsel %vm150, %v1163, 0.0
    %1174 = vadd.xlane.f32.xlu0 %v1173
    %v1175 = vpop.xlane.xlu0 %1174
    %v1176 = vmul.f32 %v1166, %v861
    %v1177 = vmul.f32 %v1169, %v861
    %v1178 = vmul.f32 %v1172, %v861
    %v1179 = vmul.f32 %v1175, %v861
    %v1180 = vadd.f32 %v1176, 1e-05
    %v1181 = vadd.f32 %v1177, 1e-05
    %v1182 = vadd.f32 %v1178, 1e-05
    %v1183 = vadd.f32 %v1179, 1e-05
    %v1184 = vrsqrt.pop %v1180
    %v1185 = vrsqrt.pop %v1181
    %v1186 = vrsqrt.pop %v1182
    %v1187 = vrsqrt.pop %v1183
    %v1188 = vmul.f32 %v1156, %v1184
    %v1189 = vmul.f32 %v1157, %v1185
    %v1190 = vmul.f32 %v1158, %v1186
    %v1191 = vmul.f32 %v1159, %v1187
    %v1192 = vlaneseq
    %v1193 = vshrl.u32 %v1192, 7
    %v1194 = vsub.s32 0, %v1193
    %v1195 = vrot.slane %v1138, %v1194
    %v1196 = vmul.f32 %v1188, %v1195
    %v1197 = vmul.f32 %v1189, %v1195
    %v1198 = vmul.f32 %v1190, %v1195
    %v1199 = vmul.f32 %v1191, %v1195
    %v1200 = vlaneseq
    %v1201 = vshrl.u32 %v1200, 7
    %v1202 = vsub.s32 0, %v1201
    %v1203 = vrot.slane %v1139, %v1202
    %v1204 = vadd.f32 %v1196, %v1203
    %v1205 = vadd.f32 %v1197, %v1203
    %v1206 = vadd.f32 %v1198, %v1203
    %v1207 = vadd.f32 %v1199, %v1203
    %v1208 = vld [vmem:[%s1 + $0x138] sm:$0xff]
    %v1209 = vld [vmem:[%s1 + $0x140] sm:$0xff]
    %v1210 = vld [vmem:[%s1 + $0x148] sm:$0xff]
    %v1211 = vld [vmem:[%s1 + $0x150] sm:$0xff]
    %v1212 = vld [vmem:[%s2 + $0x68] sm:$0x1]
    %v1213 = vlaneseq
    %v1214 = vshrl.u32 %v1213, 7
    %v1215 = vsub.s32 0, %v1214
    %v1216 = vrot.slane %v1212, %v1215
    %v1218 = vsel %vm150, %v1204, 0
    %v1221 = vsel %vm150, %v1205, 0
    %v1224 = vsel %vm150, %v1206, 0
    %v1227 = vsel %vm150, %v1207, 0
    %1229 = vmatprep.subr.mxu0 0.0
    %1230 = vmatpush1.msra.mxu0 0.0
    %1231 = vmatprep.subr.mxu0 0.0
    %1232 = vmatpush1.msra.mxu0 0.0
    %1233 = vmatprep.subr.mxu0 0.0
    %1234 = vmatpush1.msra.mxu0 0.0
    %1235 = vmatprep.subr.mxu0 0.0
    %1236 = vmatpush1.msra.mxu0 0.0
    %1237 = vmatprep.subr.mxu0 0.0
    %1238 = vmatpush1.msra.mxu0 0.0
    %1239 = vmatprep.subr.mxu0 0.0
    %1240 = vmatpush1.msra.mxu0 0.0
    %1241 = vmatprep.subr.mxu0 0.0
    %1242 = vmatpush1.msra.mxu0 0.0
    %1243 = vmatprep.subr.mxu0 0.0
    %1244 = vmatpush1.msra.mxu0 0.0
    %1245 = vmatprep.subr.mxu0 0.0
    %1246 = vmatpush1.msra.mxu0 0.0
    %1247 = vmatprep.subr.mxu0 0.0
    %1248 = vmatpush1.msra.mxu0 0.0
    %1249 = vmatprep.subr.mxu0 0.0
    %1250 = vmatpush1.msra.mxu0 0.0
    %1251 = vmatprep.subr.mxu0 0.0
    %1252 = vmatpush1.msra.mxu0 0.0
    %1253 = vmatprep.subr.mxu0 0.0
    %1254 = vmatpush1.msra.mxu0 %v1211
    %1255 = vmatprep.subr.mxu0 0.0
    %1256 = vmatpush1.msra.mxu0 %v1210
    %1257 = vmatprep.subr.mxu0 0.0
    %1258 = vmatpush1.msra.mxu0 %v1209
    %1259 = vmatprep.subr.mxu0 0.0
    %1260 = vmatpush1.msra.mxu0 %v1208
    %1261 = vmatprep.subr.mxu0 0.0
    %1262 = vmatpush2.msra.mxu0 0.0
    %1263 = vmatprep.subr.mxu0 0.0
    %1264 = vmatpush2.msra.mxu0 0.0
    %1265 = vmatprep.subr.mxu0 0.0
    %1266 = vmatpush2.msra.mxu0 0.0
    %1267 = vmatprep.subr.mxu0 0.0
    %1268 = vmatpush2.msra.mxu0 0.0
    %1269 = vmatprep.subr.mxu0 0.0
    %1270 = vmatpush2.msra.mxu0 0.0
    %1271 = vmatprep.subr.mxu0 0.0
    %1272 = vmatpush2.msra.mxu0 0.0
    %1273 = vmatprep.subr.mxu0 0.0
    %1274 = vmatpush2.msra.mxu0 0.0
    %1275 = vmatprep.subr.mxu0 0.0
    %1276 = vmatpush2.msra.mxu0 0.0
    %1277 = vmatprep.subr.mxu0 0.0
    %1278 = vmatpush2.msra.mxu0 0.0
    %1279 = vmatprep.subr.mxu0 0.0
    %1280 = vmatpush2.msra.mxu0 0.0
    %1281 = vmatprep.subr.mxu0 0.0
    %1282 = vmatpush2.msra.mxu0 0.0
    %1283 = vmatprep.subr.mxu0 0.0
    %1284 = vmatpush2.msra.mxu0 0.0
    %1285 = vmatprep.subr.mxu0 0.0
    %1286 = vmatpush2.msra.mxu0 0.0
    %1287 = vmatprep.subr.mxu0 0.0
    %1288 = vmatpush2.msra.mxu0 0.0
    %1289 = vmatprep.subr.mxu0 0.0
    %1290 = vmatpush2.msra.mxu0 0.0
    %1291 = vmatprep.subr.mxu0 0.0
    %1292 = vmatpush2.msra.mxu0 0.0
    %1293 = vmatprep.mubr.f32.mxu0 0.0
    %1294 = vmatmul.mubr.f32.gmra.mxu0 %v1218
    %v1295 = vpop.f32.mrf.mxu0
    %v1296 = vadd.f32 %v1216, %v1295
    %v1297 = vpop.f32.mrf.mxu0
    %1298 = vmatprep.mubr.f32.mxu0 0.0
    %1299 = vmatmul.mubr.f32.gmra.mxu0 %v1221
    %v1300 = vpop.f32.mrf.mxu0
    %v1301 = vadd.f32 %v1216, %v1300
    %v1302 = vpop.f32.mrf.mxu0
    %1303 = vmatprep.mubr.f32.mxu0 0.0
    %1304 = vmatmul.mubr.f32.gmra.mxu0 %v1224
    %v1305 = vpop.f32.mrf.mxu0
    %v1306 = vadd.f32 %v1216, %v1305
    %v1307 = vpop.f32.mrf.mxu0
    %1308 = vmatprep.mubr.f32.mxu0 0.0
    %1309 = vmatmul.mubr.f32.gmra.mxu0 %v1227
    %v1310 = vpop.f32.mrf.mxu0
    %v1311 = vadd.f32 %v1216, %v1310
    %v1312 = vpop.f32.mrf.mxu0
    %1313 = vdwg.mxu0
    %1318 = vrot.lane.b32.xlu0 %v1296, 96
    %v1319 = vpop.permute.xlu0 %1318
    %1320 = vrot.lane.b32.xlu0 %v1301, 96
    %v1321 = vpop.permute.xlu0 %1320
    %1322 = vrot.lane.b32.xlu0 %v1306, 96
    %v1323 = vpop.permute.xlu0 %1322
    %1324 = vrot.lane.b32.xlu0 %v1311, 96
    %v1325 = vpop.permute.xlu0 %1324
    %v1330 = vmul.f32 %v1296, %v1319
    %v1331 = vmul.f32 %v1301, %v1321
    %v1332 = vmul.f32 %v1306, %v1323
    %v1333 = vmul.f32 %v1311, %v1325
    %v1335 = vsel %vm150, %v1330, 0
    %v1338 = vsel %vm150, %v1331, 0
    %v1341 = vsel %vm150, %v1332, 0
    %v1344 = vsel %vm150, %v1333, 0
    %1346 = vmatprep.subr.mxu0 0.0
    %1347 = vmatpush1.msra.mxu0 0.0
    %1348 = vmatprep.subr.mxu0 0.0
    %1349 = vmatpush1.msra.mxu0 0.0
    %1350 = vmatprep.subr.mxu0 0.0
    %1351 = vmatpush1.msra.mxu0 0.0
    %1352 = vmatprep.subr.mxu0 0.0
    %1353 = vmatpush1.msra.mxu0 0.0
    %1354 = vmatprep.subr.mxu0 0.0
    %1355 = vmatpush1.msra.mxu0 0.0
    %1356 = vmatprep.subr.mxu0 0.0
    %1357 = vmatpush1.msra.mxu0 0.0
    %1358 = vmatprep.subr.mxu0 0.0
    %1359 = vmatpush1.msra.mxu0 0.0
    %1360 = vmatprep.subr.mxu0 0.0
    %1361 = vmatpush1.msra.mxu0 0.0
    %1362 = vmatprep.subr.mxu0 0.0
    %1363 = vmatpush1.msra.mxu0 0.0
    %1364 = vmatprep.subr.mxu0 0.0
    %1365 = vmatpush1.msra.mxu0 0.0
    %1366 = vmatprep.subr.mxu0 0.0
    %1367 = vmatpush1.msra.mxu0 0.0
    %1368 = vmatprep.subr.mxu0 0.0
    %1369 = vmatpush1.msra.mxu0 0.0
    %1370 = vmatprep.subr.mxu0 0.0
    %1371 = vmatpush1.msra.mxu0 %v18
    %1372 = vmatprep.subr.mxu0 0.0
    %1373 = vmatpush1.msra.mxu0 %v17
    %1374 = vmatprep.subr.mxu0 0.0
    %1375 = vmatpush1.msra.mxu0 %v16
    %1376 = vmatprep.subr.mxu0 0.0
    %1377 = vmatpush1.msra.mxu0 %v15
    %1378 = vmatprep.subr.mxu0 0.0
    %1379 = vmatpush2.msra.mxu0 0.0
    %1380 = vmatprep.subr.mxu0 0.0
    %1381 = vmatpush2.msra.mxu0 0.0
    %1382 = vmatprep.subr.mxu0 0.0
    %1383 = vmatpush2.msra.mxu0 0.0
    %1384 = vmatprep.subr.mxu0 0.0
    %1385 = vmatpush2.msra.mxu0 0.0
    %1386 = vmatprep.subr.mxu0 0.0
    %1387 = vmatpush2.msra.mxu0 0.0
    %1388 = vmatprep.subr.mxu0 0.0
    %1389 = vmatpush2.msra.mxu0 0.0
    %1390 = vmatprep.subr.mxu0 0.0
    %1391 = vmatpush2.msra.mxu0 0.0
    %1392 = vmatprep.subr.mxu0 0.0
    %1393 = vmatpush2.msra.mxu0 0.0
    %1394 = vmatprep.subr.mxu0 0.0
    %1395 = vmatpush2.msra.mxu0 0.0
    %1396 = vmatprep.subr.mxu0 0.0
    %1397 = vmatpush2.msra.mxu0 0.0
    %1398 = vmatprep.subr.mxu0 0.0
    %1399 = vmatpush2.msra.mxu0 0.0
    %1400 = vmatprep.subr.mxu0 0.0
    %1401 = vmatpush2.msra.mxu0 0.0
    %1402 = vmatprep.subr.mxu0 0.0
    %1403 = vmatpush2.msra.mxu0 0.0
    %1404 = vmatprep.subr.mxu0 0.0
    %1405 = vmatpush2.msra.mxu0 0.0
    %1406 = vmatprep.subr.mxu0 0.0
    %1407 = vmatpush2.msra.mxu0 0.0
    %1408 = vmatprep.subr.mxu0 0.0
    %1409 = vmatpush2.msra.mxu0 0.0
    %1410 = vmatprep.mubr.f32.mxu0 0.0
    %1411 = vmatmul.mubr.f32.gmra.mxu0 %v1335
    %v1412 = vpop.f32.mrf.mxu0
    %v1413 = vadd.f32 0.0, %v1412
    %v1414 = vpop.f32.mrf.mxu0
    %1415 = vmatprep.mubr.f32.mxu0 0.0
    %1416 = vmatmul.mubr.f32.gmra.mxu0 %v1338
    %v1417 = vpop.f32.mrf.mxu0
    %v1418 = vadd.f32 0.0, %v1417
    %v1419 = vpop.f32.mrf.mxu0
    %1420 = vmatprep.mubr.f32.mxu0 0.0
    %1421 = vmatmul.mubr.f32.gmra.mxu0 %v1341
    %v1422 = vpop.f32.mrf.mxu0
    %v1423 = vadd.f32 0.0, %v1422
    %v1424 = vpop.f32.mrf.mxu0
    %1425 = vmatprep.mubr.f32.mxu0 0.0
    %1426 = vmatmul.mubr.f32.gmra.mxu0 %v1344
    %v1427 = vpop.f32.mrf.mxu0
    %v1428 = vadd.f32 0.0, %v1427
    %v1429 = vpop.f32.mrf.mxu0
    %1430 = vdwg.mxu0
    %v1431 = vmul.f32 %v1413, 0.5
    %v1432 = vmul.f32 %v1418, 0.5
    %v1433 = vmul.f32 %v1423, 0.5
    %v1434 = vmul.f32 %v1428, 0.5
    %v1435 = vmul.f32 %v1296, %v1323
    %v1436 = vmul.f32 %v1301, %v1325
    %v1437 = vmul.f32 %v1306, %v1319
    %v1438 = vmul.f32 %v1311, %v1321
    %v1440 = vsel %vm150, %v1435, 0
    %v1443 = vsel %vm150, %v1436, 0
    %v1446 = vsel %vm150, %v1437, 0
    %v1449 = vsel %vm150, %v1438, 0
    %1451 = vmatprep.subr.mxu0 0.0
    %1452 = vmatpush1.msra.mxu0 0.0
    %1453 = vmatprep.subr.mxu0 0.0
    %1454 = vmatpush1.msra.mxu0 0.0
    %1455 = vmatprep.subr.mxu0 0.0
    %1456 = vmatpush1.msra.mxu0 0.0
    %1457 = vmatprep.subr.mxu0 0.0
    %1458 = vmatpush1.msra.mxu0 0.0
    %1459 = vmatprep.subr.mxu0 0.0
    %1460 = vmatpush1.msra.mxu0 0.0
    %1461 = vmatprep.subr.mxu0 0.0
    %1462 = vmatpush1.msra.mxu0 0.0
    %1463 = vmatprep.subr.mxu0 0.0
    %1464 = vmatpush1.msra.mxu0 0.0
    %1465 = vmatprep.subr.mxu0 0.0
    %1466 = vmatpush1.msra.mxu0 0.0
    %1467 = vmatprep.subr.mxu0 0.0
    %1468 = vmatpush1.msra.mxu0 0.0
    %1469 = vmatprep.subr.mxu0 0.0
    %1470 = vmatpush1.msra.mxu0 0.0
    %1471 = vmatprep.subr.mxu0 0.0
    %1472 = vmatpush1.msra.mxu0 0.0
    %1473 = vmatprep.subr.mxu0 0.0
    %1474 = vmatpush1.msra.mxu0 0.0
    %1475 = vmatprep.subr.mxu0 0.0
    %1476 = vmatpush1.msra.mxu0 %v18
    %1477 = vmatprep.subr.mxu0 0.0
    %1478 = vmatpush1.msra.mxu0 %v17
    %1479 = vmatprep.subr.mxu0 0.0
    %1480 = vmatpush1.msra.mxu0 %v16
    %1481 = vmatprep.subr.mxu0 0.0
    %1482 = vmatpush1.msra.mxu0 %v15
    %1483 = vmatprep.subr.mxu0 0.0
    %1484 = vmatpush2.msra.mxu0 0.0
    %1485 = vmatprep.subr.mxu0 0.0
    %1486 = vmatpush2.msra.mxu0 0.0
    %1487 = vmatprep.subr.mxu0 0.0
    %1488 = vmatpush2.msra.mxu0 0.0
    %1489 = vmatprep.subr.mxu0 0.0
    %1490 = vmatpush2.msra.mxu0 0.0
    %1491 = vmatprep.subr.mxu0 0.0
    %1492 = vmatpush2.msra.mxu0 0.0
    %1493 = vmatprep.subr.mxu0 0.0
    %1494 = vmatpush2.msra.mxu0 0.0
    %1495 = vmatprep.subr.mxu0 0.0
    %1496 = vmatpush2.msra.mxu0 0.0
    %1497 = vmatprep.subr.mxu0 0.0
    %1498 = vmatpush2.msra.mxu0 0.0
    %1499 = vmatprep.subr.mxu0 0.0
    %1500 = vmatpush2.msra.mxu0 0.0
    %1501 = vmatprep.subr.mxu0 0.0
    %1502 = vmatpush2.msra.mxu0 0.0
    %1503 = vmatprep.subr.mxu0 0.0
    %1504 = vmatpush2.msra.mxu0 0.0
    %1505 = vmatprep.subr.mxu0 0.0
    %1506 = vmatpush2.msra.mxu0 0.0
    %1507 = vmatprep.subr.mxu0 0.0
    %1508 = vmatpush2.msra.mxu0 0.0
    %1509 = vmatprep.subr.mxu0 0.0
    %1510 = vmatpush2.msra.mxu0 0.0
    %1511 = vmatprep.subr.mxu0 0.0
    %1512 = vmatpush2.msra.mxu0 0.0
    %1513 = vmatprep.subr.mxu0 0.0
    %1514 = vmatpush2.msra.mxu0 0.0
    %1515 = vmatprep.mubr.f32.mxu0 0.0
    %1516 = vmatmul.mubr.f32.gmra.mxu0 %v1440
    %v1517 = vpop.f32.mrf.mxu0
    %v1518 = vadd.f32 0.0, %v1517
    %v1519 = vpop.f32.mrf.mxu0
    %1520 = vmatprep.mubr.f32.mxu0 0.0
    %1521 = vmatmul.mubr.f32.gmra.mxu0 %v1443
    %v1522 = vpop.f32.mrf.mxu0
    %v1523 = vadd.f32 0.0, %v1522
    %v1524 = vpop.f32.mrf.mxu0
    %1525 = vmatprep.mubr.f32.mxu0 0.0
    %1526 = vmatmul.mubr.f32.gmra.mxu0 %v1446
    %v1527 = vpop.f32.mrf.mxu0
    %v1528 = vadd.f32 0.0, %v1527
    %v1529 = vpop.f32.mrf.mxu0
    %1530 = vmatprep.mubr.f32.mxu0 0.0
    %1531 = vmatmul.mubr.f32.gmra.mxu0 %v1449
    %v1532 = vpop.f32.mrf.mxu0
    %v1533 = vadd.f32 0.0, %v1532
    %v1534 = vpop.f32.mrf.mxu0
    %1535 = vdwg.mxu0
    %v1536 = vmul.f32 %v1518, 0.5
    %v1537 = vmul.f32 %v1523, 0.5
    %v1538 = vmul.f32 %v1528, 0.5
    %v1539 = vmul.f32 %v1533, 0.5
    %v1540 = vmax.f32 %v1431, %v1536
    %v1541 = vmax.f32 %v1432, %v1537
    %v1542 = vmax.f32 %v1433, %v1538
    %v1543 = vmax.f32 %v1434, %v1539
    %v1544 = vsub.f32 %v1431, %v1540
    %v1545 = vsub.f32 %v1432, %v1541
    %v1546 = vsub.f32 %v1433, %v1542
    %v1547 = vsub.f32 %v1434, %v1543
    %v1548 = vmul.f32 %v1544, 1.442695
    %v1549 = vpow.pop %v1548
    %v1550 = vmul.f32 %v1545, 1.442695
    %v1551 = vpow.pop %v1550
    %v1552 = vmul.f32 %v1546, 1.442695
    %v1553 = vpow.pop %v1552
    %v1554 = vmul.f32 %v1547, 1.442695
    %v1555 = vpow.pop %v1554
    %v1556 = vsub.f32 %v1536, %v1540
    %v1557 = vsub.f32 %v1537, %v1541
    %v1558 = vsub.f32 %v1538, %v1542
    %v1559 = vsub.f32 %v1539, %v1543
    %v1560 = vmul.f32 %v1556, 1.442695
    %v1561 = vpow.pop %v1560
    %v1562 = vmul.f32 %v1557, 1.442695
    %v1563 = vpow.pop %v1562
    %v1564 = vmul.f32 %v1558, 1.442695
    %v1565 = vpow.pop %v1564
    %v1566 = vmul.f32 %v1559, 1.442695
    %v1567 = vpow.pop %v1566
    %v1568 = vadd.f32 %v1549, %v1561
    %v1569 = vadd.f32 %v1551, %v1563
    %v1570 = vadd.f32 %v1553, %v1565
    %v1571 = vadd.f32 %v1555, %v1567
    %v1572 = vrcp.pop %v1568
    %v1573 = vrcp.pop %v1569
    %v1574 = vrcp.pop %v1570
    %v1575 = vrcp.pop %v1571
    %v1576 = vmul.f32 %v1549, %v1572
    %v1577 = vmul.f32 %v1551, %v1573
    %v1578 = vmul.f32 %v1553, %v1574
    %v1579 = vmul.f32 %v1555, %v1575
    %v1581 = vsel %vm514, %v1576, 0
    %v1584 = vsel %vm514, %v1577, 0
    %v1587 = vsel %vm514, %v1578, 0
    %v1590 = vsel %vm514, %v1579, 0
    %1592 = vmatprep.subr.mxu0 0.0
    %1593 = vmatpush1.msra.mxu0 0.0
    %1594 = vmatprep.subr.mxu0 0.0
    %1595 = vmatpush1.msra.mxu0 0.0
    %1596 = vmatprep.subr.mxu0 0.0
    %1597 = vmatpush1.msra.mxu0 0.0
    %1598 = vmatprep.subr.mxu0 0.0
    %1599 = vmatpush1.msra.mxu0 0.0
    %1600 = vmatprep.subr.mxu0 0.0
    %1601 = vmatpush1.msra.mxu0 0.0
    %1602 = vmatprep.subr.mxu0 0.0
    %1603 = vmatpush1.msra.mxu0 0.0
    %1604 = vmatprep.subr.mxu0 0.0
    %1605 = vmatpush1.msra.mxu0 0.0
    %1606 = vmatprep.subr.mxu0 0.0
    %1607 = vmatpush1.msra.mxu0 0.0
    %1608 = vmatprep.subr.mxu0 0.0
    %1609 = vmatpush1.msra.mxu0 0.0
    %1610 = vmatprep.subr.mxu0 0.0
    %1611 = vmatpush1.msra.mxu0 0.0
    %1612 = vmatprep.subr.mxu0 0.0
    %1613 = vmatpush1.msra.mxu0 0.0
    %1614 = vmatprep.subr.mxu0 0.0
    %1615 = vmatpush1.msra.mxu0 0.0
    %1616 = vmatprep.subr.mxu0 0.0
    %1617 = vmatpush1.msra.mxu0 0.0
    %1618 = vmatprep.subr.mxu0 0.0
    %1619 = vmatpush1.msra.mxu0 0.0
    %1620 = vmatprep.subr.mxu0 0.0
    %1621 = vmatpush1.msra.mxu0 0.0
    %1622 = vmatprep.subr.mxu0 0.0
    %1623 = vmatpush1.msra.mxu0 %v19
    %1624 = vmatprep.subr.mxu0 0.0
    %1625 = vmatpush2.msra.mxu0 0.0
    %1626 = vmatprep.subr.mxu0 0.0
    %1627 = vmatpush2.msra.mxu0 0.0
    %1628 = vmatprep.subr.mxu0 0.0
    %1629 = vmatpush2.msra.mxu0 0.0
    %1630 = vmatprep.subr.mxu0 0.0
    %1631 = vmatpush2.msra.mxu0 0.0
    %1632 = vmatprep.subr.mxu0 0.0
    %1633 = vmatpush2.msra.mxu0 0.0
    %1634 = vmatprep.subr.mxu0 0.0
    %1635 = vmatpush2.msra.mxu0 0.0
    %1636 = vmatprep.subr.mxu0 0.0
    %1637 = vmatpush2.msra.mxu0 0.0
    %1638 = vmatprep.subr.mxu0 0.0
    %1639 = vmatpush2.msra.mxu0 0.0
    %1640 = vmatprep.subr.mxu0 0.0
    %1641 = vmatpush2.msra.mxu0 0.0
    %1642 = vmatprep.subr.mxu0 0.0
    %1643 = vmatpush2.msra.mxu0 0.0
    %1644 = vmatprep.subr.mxu0 0.0
    %1645 = vmatpush2.msra.mxu0 0.0
    %1646 = vmatprep.subr.mxu0 0.0
    %1647 = vmatpush2.msra.mxu0 0.0
    %1648 = vmatprep.subr.mxu0 0.0
    %1649 = vmatpush2.msra.mxu0 0.0
    %1650 = vmatprep.subr.mxu0 0.0
    %1651 = vmatpush2.msra.mxu0 0.0
    %1652 = vmatprep.subr.mxu0 0.0
    %1653 = vmatpush2.msra.mxu0 0.0
    %1654 = vmatprep.subr.mxu0 0.0
    %1655 = vmatpush2.msra.mxu0 0.0
    %1656 = vmatprep.mubr.f32.mxu0 0.0
    %1657 = vmatmul.mubr.f32.gmra.mxu0 %v1581
    %v1658 = vpop.f32.mrf.mxu0
    %v1659 = vadd.f32 0.0, %v1658
    %v1660 = vpop.f32.mrf.mxu0
    %1661 = vmatprep.mubr.f32.mxu0 0.0
    %1662 = vmatmul.mubr.f32.gmra.mxu0 %v1584
    %v1663 = vpop.f32.mrf.mxu0
    %v1664 = vadd.f32 0.0, %v1663
    %v1665 = vpop.f32.mrf.mxu0
    %1666 = vmatprep.mubr.f32.mxu0 0.0
    %1667 = vmatmul.mubr.f32.gmra.mxu0 %v1587
    %v1668 = vpop.f32.mrf.mxu0
    %v1669 = vadd.f32 0.0, %v1668
    %v1670 = vpop.f32.mrf.mxu0
    %1671 = vmatprep.mubr.f32.mxu0 0.0
    %1672 = vmatmul.mubr.f32.gmra.mxu0 %v1590
    %v1673 = vpop.f32.mrf.mxu0
    %v1674 = vadd.f32 0.0, %v1673
    %v1675 = vpop.f32.mrf.mxu0
    %1676 = vdwg.mxu0
    %1677 = vrot.lane.b32.xlu0 %v1296, 64
    %v1678 = vpop.permute.xlu0 %1677
    %1679 = vrot.lane.b32.xlu0 %v1301, 64
    %v1680 = vpop.permute.xlu0 %1679
    %1681 = vrot.lane.b32.xlu0 %v1306, 64
    %v1682 = vpop.permute.xlu0 %1681
    %1683 = vrot.lane.b32.xlu0 %v1311, 64
    %v1684 = vpop.permute.xlu0 %1683
    %v1689 = vmul.f32 %v1659, %v1678
    %v1690 = vmul.f32 %v1664, %v1680
    %v1691 = vmul.f32 %v1669, %v1682
    %v1692 = vmul.f32 %v1674, %v1684
    %v1693 = vmul.f32 %v1561, %v1572
    %v1694 = vmul.f32 %v1563, %v1573
    %v1695 = vmul.f32 %v1565, %v1574
    %v1696 = vmul.f32 %v1567, %v1575
    %v1698 = vsel %vm514, %v1693, 0
    %v1701 = vsel %vm514, %v1694, 0
    %v1704 = vsel %vm514, %v1695, 0
    %v1707 = vsel %vm514, %v1696, 0
    %1709 = vmatprep.subr.mxu0 0.0
    %1710 = vmatpush1.msra.mxu0 0.0
    %1711 = vmatprep.subr.mxu0 0.0
    %1712 = vmatpush1.msra.mxu0 0.0
    %1713 = vmatprep.subr.mxu0 0.0
    %1714 = vmatpush1.msra.mxu0 0.0
    %1715 = vmatprep.subr.mxu0 0.0
    %1716 = vmatpush1.msra.mxu0 0.0
    %1717 = vmatprep.subr.mxu0 0.0
    %1718 = vmatpush1.msra.mxu0 0.0
    %1719 = vmatprep.subr.mxu0 0.0
    %1720 = vmatpush1.msra.mxu0 0.0
    %1721 = vmatprep.subr.mxu0 0.0
    %1722 = vmatpush1.msra.mxu0 0.0
    %1723 = vmatprep.subr.mxu0 0.0
    %1724 = vmatpush1.msra.mxu0 0.0
    %1725 = vmatprep.subr.mxu0 0.0
    %1726 = vmatpush1.msra.mxu0 0.0
    %1727 = vmatprep.subr.mxu0 0.0
    %1728 = vmatpush1.msra.mxu0 0.0
    %1729 = vmatprep.subr.mxu0 0.0
    %1730 = vmatpush1.msra.mxu0 0.0
    %1731 = vmatprep.subr.mxu0 0.0
    %1732 = vmatpush1.msra.mxu0 0.0
    %1733 = vmatprep.subr.mxu0 0.0
    %1734 = vmatpush1.msra.mxu0 0.0
    %1735 = vmatprep.subr.mxu0 0.0
    %1736 = vmatpush1.msra.mxu0 0.0
    %1737 = vmatprep.subr.mxu0 0.0
    %1738 = vmatpush1.msra.mxu0 0.0
    %1739 = vmatprep.subr.mxu0 0.0
    %1740 = vmatpush1.msra.mxu0 %v19
    %1741 = vmatprep.subr.mxu0 0.0
    %1742 = vmatpush2.msra.mxu0 0.0
    %1743 = vmatprep.subr.mxu0 0.0
    %1744 = vmatpush2.msra.mxu0 0.0
    %1745 = vmatprep.subr.mxu0 0.0
    %1746 = vmatpush2.msra.mxu0 0.0
    %1747 = vmatprep.subr.mxu0 0.0
    %1748 = vmatpush2.msra.mxu0 0.0
    %1749 = vmatprep.subr.mxu0 0.0
    %1750 = vmatpush2.msra.mxu0 0.0
    %1751 = vmatprep.subr.mxu0 0.0
    %1752 = vmatpush2.msra.mxu0 0.0
    %1753 = vmatprep.subr.mxu0 0.0
    %1754 = vmatpush2.msra.mxu0 0.0
    %1755 = vmatprep.subr.mxu0 0.0
    %1756 = vmatpush2.msra.mxu0 0.0
    %1757 = vmatprep.subr.mxu0 0.0
    %1758 = vmatpush2.msra.mxu0 0.0
    %1759 = vmatprep.subr.mxu0 0.0
    %1760 = vmatpush2.msra.mxu0 0.0
    %1761 = vmatprep.subr.mxu0 0.0
    %1762 = vmatpush2.msra.mxu0 0.0
    %1763 = vmatprep.subr.mxu0 0.0
    %1764 = vmatpush2.msra.mxu0 0.0
    %1765 = vmatprep.subr.mxu0 0.0
    %1766 = vmatpush2.msra.mxu0 0.0
    %1767 = vmatprep.subr.mxu0 0.0
    %1768 = vmatpush2.msra.mxu0 0.0
    %1769 = vmatprep.subr.mxu0 0.0
    %1770 = vmatpush2.msra.mxu0 0.0
    %1771 = vmatprep.subr.mxu0 0.0
    %1772 = vmatpush2.msra.mxu0 0.0
    %1773 = vmatprep.mubr.f32.mxu0 0.0
    %1774 = vmatmul.mubr.f32.gmra.mxu0 %v1698
    %v1775 = vpop.f32.mrf.mxu0
    %v1776 = vadd.f32 0.0, %v1775
    %v1777 = vpop.f32.mrf.mxu0
    %1778 = vmatprep.mubr.f32.mxu0 0.0
    %1779 = vmatmul.mubr.f32.gmra.mxu0 %v1701
    %v1780 = vpop.f32.mrf.mxu0
    %v1781 = vadd.f32 0.0, %v1780
    %v1782 = vpop.f32.mrf.mxu0
    %1783 = vmatprep.mubr.f32.mxu0 0.0
    %1784 = vmatmul.mubr.f32.gmra.mxu0 %v1704
    %v1785 = vpop.f32.mrf.mxu0
    %v1786 = vadd.f32 0.0, %v1785
    %v1787 = vpop.f32.mrf.mxu0
    %1788 = vmatprep.mubr.f32.mxu0 0.0
    %1789 = vmatmul.mubr.f32.gmra.mxu0 %v1707
    %v1790 = vpop.f32.mrf.mxu0
    %v1791 = vadd.f32 0.0, %v1790
    %v1792 = vpop.f32.mrf.mxu0
    %1793 = vdwg.mxu0
    %v1794 = vmul.f32 %v1776, %v1682
    %v1795 = vmul.f32 %v1781, %v1684
    %v1796 = vmul.f32 %v1786, %v1678
    %v1797 = vmul.f32 %v1791, %v1680
    %v1798 = vadd.f32 %v1689, %v1794
    %v1799 = vadd.f32 %v1690, %v1795
    %v1800 = vadd.f32 %v1691, %v1796
    %v1801 = vadd.f32 %v1692, %v1797
    %v1802 = vld [vmem:[%s1 + $0x158] sm:$0xff]
    %v1803 = vld [vmem:[%s1 + $0x160] sm:$0xff]
    %v1804 = vld [vmem:[%s1 + $0x168] sm:$0xff]
    %v1805 = vld [vmem:[%s1 + $0x170] sm:$0xff]
    %v1806 = vld [vmem:[%s2 + $0x70] sm:$0x1]
    %v1807 = vlaneseq
    %v1808 = vshrl.u32 %v1807, 7
    %v1809 = vsub.s32 0, %v1808
    %v1810 = vrot.slane %v1806, %v1809
    %v1812 = vsel %vm150, %v1798, 0
    %v1815 = vsel %vm150, %v1799, 0
    %v1818 = vsel %vm150, %v1800, 0
    %v1821 = vsel %vm150, %v1801, 0
    %1823 = vmatprep.subr.mxu0 0.0
    %1824 = vmatpush1.msra.mxu0 0.0
    %1825 = vmatprep.subr.mxu0 0.0
    %1826 = vmatpush1.msra.mxu0 0.0
    %1827 = vmatprep.subr.mxu0 0.0
    %1828 = vmatpush1.msra.mxu0 0.0
    %1829 = vmatprep.subr.mxu0 0.0
    %1830 = vmatpush1.msra.mxu0 0.0
    %1831 = vmatprep.subr.mxu0 0.0
    %1832 = vmatpush1.msra.mxu0 0.0
    %1833 = vmatprep.subr.mxu0 0.0
    %1834 = vmatpush1.msra.mxu0 0.0
    %1835 = vmatprep.subr.mxu0 0.0
    %1836 = vmatpush1.msra.mxu0 0.0
    %1837 = vmatprep.subr.mxu0 0.0
    %1838 = vmatpush1.msra.mxu0 0.0
    %1839 = vmatprep.subr.mxu0 0.0
    %1840 = vmatpush1.msra.mxu0 0.0
    %1841 = vmatprep.subr.mxu0 0.0
    %1842 = vmatpush1.msra.mxu0 0.0
    %1843 = vmatprep.subr.mxu0 0.0
    %1844 = vmatpush1.msra.mxu0 0.0
    %1845 = vmatprep.subr.mxu0 0.0
    %1846 = vmatpush1.msra.mxu0 0.0
    %1847 = vmatprep.subr.mxu0 0.0
    %1848 = vmatpush1.msra.mxu0 %v1805
    %1849 = vmatprep.subr.mxu0 0.0
    %1850 = vmatpush1.msra.mxu0 %v1804
    %1851 = vmatprep.subr.mxu0 0.0
    %1852 = vmatpush1.msra.mxu0 %v1803
    %1853 = vmatprep.subr.mxu0 0.0
    %1854 = vmatpush1.msra.mxu0 %v1802
    %1855 = vmatprep.subr.mxu0 0.0
    %1856 = vmatpush2.msra.mxu0 0.0
    %1857 = vmatprep.subr.mxu0 0.0
    %1858 = vmatpush2.msra.mxu0 0.0
    %1859 = vmatprep.subr.mxu0 0.0
    %1860 = vmatpush2.msra.mxu0 0.0
    %1861 = vmatprep.subr.mxu0 0.0
    %1862 = vmatpush2.msra.mxu0 0.0
    %1863 = vmatprep.subr.mxu0 0.0
    %1864 = vmatpush2.msra.mxu0 0.0
    %1865 = vmatprep.subr.mxu0 0.0
    %1866 = vmatpush2.msra.mxu0 0.0
    %1867 = vmatprep.subr.mxu0 0.0
    %1868 = vmatpush2.msra.mxu0 0.0
    %1869 = vmatprep.subr.mxu0 0.0
    %1870 = vmatpush2.msra.mxu0 0.0
    %1871 = vmatprep.subr.mxu0 0.0
    %1872 = vmatpush2.msra.mxu0 0.0
    %1873 = vmatprep.subr.mxu0 0.0
    %1874 = vmatpush2.msra.mxu0 0.0
    %1875 = vmatprep.subr.mxu0 0.0
    %1876 = vmatpush2.msra.mxu0 0.0
    %1877 = vmatprep.subr.mxu0 0.0
    %1878 = vmatpush2.msra.mxu0 0.0
    %1879 = vmatprep.subr.mxu0 0.0
    %1880 = vmatpush2.msra.mxu0 0.0
    %1881 = vmatprep.subr.mxu0 0.0
    %1882 = vmatpush2.msra.mxu0 0.0
    %1883 = vmatprep.subr.mxu0 0.0
    %1884 = vmatpush2.msra.mxu0 0.0
    %1885 = vmatprep.subr.mxu0 0.0
    %1886 = vmatpush2.msra.mxu0 0.0
    %1887 = vmatprep.mubr.f32.mxu0 0.0
    %1888 = vmatmul.mubr.f32.gmra.mxu0 %v1812
    %v1889 = vpop.f32.mrf.mxu0
    %v1890 = vadd.f32 %v1810, %v1889
    %v1891 = vpop.f32.mrf.mxu0
    %1892 = vmatprep.mubr.f32.mxu0 0.0
    %1893 = vmatmul.mubr.f32.gmra.mxu0 %v1815
    %v1894 = vpop.f32.mrf.mxu0
    %v1895 = vadd.f32 %v1810, %v1894
    %v1896 = vpop.f32.mrf.mxu0
    %1897 = vmatprep.mubr.f32.mxu0 0.0
    %1898 = vmatmul.mubr.f32.gmra.mxu0 %v1818
    %v1899 = vpop.f32.mrf.mxu0
    %v1900 = vadd.f32 %v1810, %v1899
    %v1901 = vpop.f32.mrf.mxu0
    %1902 = vmatprep.mubr.f32.mxu0 0.0
    %1903 = vmatmul.mubr.f32.gmra.mxu0 %v1821
    %v1904 = vpop.f32.mrf.mxu0
    %v1905 = vadd.f32 %v1810, %v1904
    %v1906 = vpop.f32.mrf.mxu0
    %1907 = vdwg.mxu0
    %v1908 = vadd.f32 %v1204, %v1890
    %v1909 = vadd.f32 %v1205, %v1895
    %v1910 = vadd.f32 %v1206, %v1900
    %v1911 = vadd.f32 %v1207, %v1905
    %v1912 = vld [vmem:[%s2 + $0x78] sm:$0x1]
    %v1913 = vld [vmem:[%s2 + $0x80] sm:$0x1]
    %v1914 = vsel %vm150, %v1908, 0.0
    %1915 = vadd.xlane.f32.xlu0 %v1914
    %v1916 = vpop.xlane.xlu0 %1915
    %v1917 = vsel %vm150, %v1909, 0.0
    %1918 = vadd.xlane.f32.xlu0 %v1917
    %v1919 = vpop.xlane.xlu0 %1918
    %v1920 = vsel %vm150, %v1910, 0.0
    %1921 = vadd.xlane.f32.xlu0 %v1920
    %v1922 = vpop.xlane.xlu0 %1921
    %v1923 = vsel %vm150, %v1911, 0.0
    %1924 = vadd.xlane.f32.xlu0 %v1923
    %v1925 = vpop.xlane.xlu0 %1924
    %v1926 = vmul.f32 %v1916, %v861
    %v1927 = vmul.f32 %v1919, %v861
    %v1928 = vmul.f32 %v1922, %v861
    %v1929 = vmul.f32 %v1925, %v861
    %v1930 = vsub.f32 %v1908, %v1926
    %v1931 = vsub.f32 %v1909, %v1927
    %v1932 = vsub.f32 %v1910, %v1928
    %v1933 = vsub.f32 %v1911, %v1929
    %v1934 = vmul.f32 %v1930, %v1930
    %v1935 = vmul.f32 %v1931, %v1931
    %v1936 = vmul.f32 %v1932, %v1932
    %v1937 = vmul.f32 %v1933, %v1933
    %v1938 = vsel %vm150, %v1934, 0.0
    %1939 = vadd.xlane.f32.xlu0 %v1938
    %v1940 = vpop.xlane.xlu0 %1939
    %v1941 = vsel %vm150, %v1935, 0.0
    %1942 = vadd.xlane.f32.xlu0 %v1941
    %v1943 = vpop.xlane.xlu0 %1942
    %v1944 = vsel %vm150, %v1936, 0.0
    %1945 = vadd.xlane.f32.xlu0 %v1944
    %v1946 = vpop.xlane.xlu0 %1945
    %v1947 = vsel %vm150, %v1937, 0.0
    %1948 = vadd.xlane.f32.xlu0 %v1947
    %v1949 = vpop.xlane.xlu0 %1948
    %v1950 = vmul.f32 %v1940, %v861
    %v1951 = vmul.f32 %v1943, %v861
    %v1952 = vmul.f32 %v1946, %v861
    %v1953 = vmul.f32 %v1949, %v861
    %v1954 = vadd.f32 %v1950, 1e-05
    %v1955 = vadd.f32 %v1951, 1e-05
    %v1956 = vadd.f32 %v1952, 1e-05
    %v1957 = vadd.f32 %v1953, 1e-05
    %v1958 = vrsqrt.pop %v1954
    %v1959 = vrsqrt.pop %v1955
    %v1960 = vrsqrt.pop %v1956
    %v1961 = vrsqrt.pop %v1957
    %v1962 = vmul.f32 %v1930, %v1958
    %v1963 = vmul.f32 %v1931, %v1959
    %v1964 = vmul.f32 %v1932, %v1960
    %v1965 = vmul.f32 %v1933, %v1961
    %v1966 = vlaneseq
    %v1967 = vshrl.u32 %v1966, 7
    %v1968 = vsub.s32 0, %v1967
    %v1969 = vrot.slane %v1912, %v1968
    %v1970 = vmul.f32 %v1962, %v1969
    %v1971 = vmul.f32 %v1963, %v1969
    %v1972 = vmul.f32 %v1964, %v1969
    %v1973 = vmul.f32 %v1965, %v1969
    %v1974 = vlaneseq
    %v1975 = vshrl.u32 %v1974, 7
    %v1976 = vsub.s32 0, %v1975
    %v1977 = vrot.slane %v1913, %v1976
    %v1978 = vadd.f32 %v1970, %v1977
    %v1979 = vadd.f32 %v1971, %v1977
    %v1980 = vadd.f32 %v1972, %v1977
    %v1981 = vadd.f32 %v1973, %v1977
    %v1982 = vld [vmem:[%s1 + $0x178] sm:$0xff]
    %v1983 = vld [vmem:[%s1 + $0x180] sm:$0xff]
    %v1984 = vld [vmem:[%s1 + $0x188] sm:$0xff]
    %v1985 = vld [vmem:[%s1 + $0x190] sm:$0xff]
    %v1986 = vld [vmem:[%s2 + $0x88] sm:$0x1]
    %v1987 = vlaneseq
    %v1988 = vshrl.u32 %v1987, 7
    %v1989 = vsub.s32 0, %v1988
    %v1990 = vrot.slane %v1986, %v1989
    %v1992 = vsel %vm150, %v1978, 0
    %v1995 = vsel %vm150, %v1979, 0
    %v1998 = vsel %vm150, %v1980, 0
    %v2001 = vsel %vm150, %v1981, 0
    %2003 = vmatprep.subr.mxu0 0.0
    %2004 = vmatpush1.msra.mxu0 0.0
    %2005 = vmatprep.subr.mxu0 0.0
    %2006 = vmatpush1.msra.mxu0 0.0
    %2007 = vmatprep.subr.mxu0 0.0
    %2008 = vmatpush1.msra.mxu0 0.0
    %2009 = vmatprep.subr.mxu0 0.0
    %2010 = vmatpush1.msra.mxu0 0.0
    %2011 = vmatprep.subr.mxu0 0.0
    %2012 = vmatpush1.msra.mxu0 0.0
    %2013 = vmatprep.subr.mxu0 0.0
    %2014 = vmatpush1.msra.mxu0 0.0
    %2015 = vmatprep.subr.mxu0 0.0
    %2016 = vmatpush1.msra.mxu0 0.0
    %2017 = vmatprep.subr.mxu0 0.0
    %2018 = vmatpush1.msra.mxu0 0.0
    %2019 = vmatprep.subr.mxu0 0.0
    %2020 = vmatpush1.msra.mxu0 0.0
    %2021 = vmatprep.subr.mxu0 0.0
    %2022 = vmatpush1.msra.mxu0 0.0
    %2023 = vmatprep.subr.mxu0 0.0
    %2024 = vmatpush1.msra.mxu0 0.0
    %2025 = vmatprep.subr.mxu0 0.0
    %2026 = vmatpush1.msra.mxu0 0.0
    %2027 = vmatprep.subr.mxu0 0.0
    %2028 = vmatpush1.msra.mxu0 %v1985
    %2029 = vmatprep.subr.mxu0 0.0
    %2030 = vmatpush1.msra.mxu0 %v1984
    %2031 = vmatprep.subr.mxu0 0.0
    %2032 = vmatpush1.msra.mxu0 %v1983
    %2033 = vmatprep.subr.mxu0 0.0
    %2034 = vmatpush1.msra.mxu0 %v1982
    %2035 = vmatprep.subr.mxu0 0.0
    %2036 = vmatpush2.msra.mxu0 0.0
    %2037 = vmatprep.subr.mxu0 0.0
    %2038 = vmatpush2.msra.mxu0 0.0
    %2039 = vmatprep.subr.mxu0 0.0
    %2040 = vmatpush2.msra.mxu0 0.0
    %2041 = vmatprep.subr.mxu0 0.0
    %2042 = vmatpush2.msra.mxu0 0.0
    %2043 = vmatprep.subr.mxu0 0.0
    %2044 = vmatpush2.msra.mxu0 0.0
    %2045 = vmatprep.subr.mxu0 0.0
    %2046 = vmatpush2.msra.mxu0 0.0
    %2047 = vmatprep.subr.mxu0 0.0
    %2048 = vmatpush2.msra.mxu0 0.0
    %2049 = vmatprep.subr.mxu0 0.0
    %2050 = vmatpush2.msra.mxu0 0.0
    %2051 = vmatprep.subr.mxu0 0.0
    %2052 = vmatpush2.msra.mxu0 0.0
    %2053 = vmatprep.subr.mxu0 0.0
    %2054 = vmatpush2.msra.mxu0 0.0
    %2055 = vmatprep.subr.mxu0 0.0
    %2056 = vmatpush2.msra.mxu0 0.0
    %2057 = vmatprep.subr.mxu0 0.0
    %2058 = vmatpush2.msra.mxu0 0.0
    %2059 = vmatprep.subr.mxu0 0.0
    %2060 = vmatpush2.msra.mxu0 0.0
    %2061 = vmatprep.subr.mxu0 0.0
    %2062 = vmatpush2.msra.mxu0 0.0
    %2063 = vmatprep.subr.mxu0 0.0
    %2064 = vmatpush2.msra.mxu0 0.0
    %2065 = vmatprep.subr.mxu0 0.0
    %2066 = vmatpush2.msra.mxu0 0.0
    %2067 = vmatprep.mubr.f32.mxu0 0.0
    %2068 = vmatmul.mubr.f32.gmra.mxu0 %v1992
    %v2069 = vpop.f32.mrf.mxu0
    %v2070 = vadd.f32 %v1990, %v2069
    %v2071 = vpop.f32.mrf.mxu0
    %2072 = vmatprep.mubr.f32.mxu0 0.0
    %2073 = vmatmul.mubr.f32.gmra.mxu0 %v1995
    %v2074 = vpop.f32.mrf.mxu0
    %v2075 = vadd.f32 %v1990, %v2074
    %v2076 = vpop.f32.mrf.mxu0
    %2077 = vmatprep.mubr.f32.mxu0 0.0
    %2078 = vmatmul.mubr.f32.gmra.mxu0 %v1998
    %v2079 = vpop.f32.mrf.mxu0
    %v2080 = vadd.f32 %v1990, %v2079
    %v2081 = vpop.f32.mrf.mxu0
    %2082 = vmatprep.mubr.f32.mxu0 0.0
    %2083 = vmatmul.mubr.f32.gmra.mxu0 %v2001
    %v2084 = vpop.f32.mrf.mxu0
    %v2085 = vadd.f32 %v1990, %v2084
    %v2086 = vpop.f32.mrf.mxu0
    %2087 = vdwg.mxu0
    %v2088 = vmax.f32 %v2070, 0.0
    %v2089 = vmax.f32 %v2075, 0.0
    %v2090 = vmax.f32 %v2080, 0.0
    %v2091 = vmax.f32 %v2085, 0.0
    %v2092 = vld [vmem:[%s1 + $0x198] sm:$0xff]
    %v2093 = vld [vmem:[%s1 + $0x1a0] sm:$0xff]
    %v2094 = vld [vmem:[%s1 + $0x1a8] sm:$0xff]
    %v2095 = vld [vmem:[%s1 + $0x1b0] sm:$0xff]
    %v2096 = vld [vmem:[%s1 + $0x1b8] sm:$0xff]
    %v2097 = vld [vmem:[%s1 + $0x1c0] sm:$0xff]
    %v2098 = vld [vmem:[%s1 + $0x1c8] sm:$0xff]
    %v2099 = vld [vmem:[%s1 + $0x1d0] sm:$0xff]
    %v2100 = vld [vmem:[%s1 + $0x1d8] sm:$0xff]
    %v2101 = vld [vmem:[%s1 + $0x1e0] sm:$0xff]
    %v2102 = vld [vmem:[%s1 + $0x1e8] sm:$0xff]
    %v2103 = vld [vmem:[%s1 + $0x1f0] sm:$0xff]
    %v2104 = vld [vmem:[%s1 + $0x1f8] sm:$0xff]
    %v2105 = vld [vmem:[%s1 + $0x200] sm:$0xff]
    %v2106 = vld [vmem:[%s1 + $0x208] sm:$0xff]
    %v2107 = vld [vmem:[%s1 + $0x210] sm:$0xff]
    %v2108 = vld [vmem:[%s2 + $0x90] sm:$0x1]
    %v2109 = vlaneseq
    %v2110 = vshrl.u32 %v2109, 7
    %v2111 = vsub.s32 0, %v2110
    %v2112 = vrot.slane %v2108, %v2111
    %2113 = vmatprep.subr.mxu0 0.0
    %2114 = vmatpush1.msra.mxu0 %v2107
    %2115 = vmatprep.subr.mxu0 0.0
    %2116 = vmatpush1.msra.mxu0 %v2106
    %2117 = vmatprep.subr.mxu0 0.0
    %2118 = vmatpush1.msra.mxu0 %v2105
    %2119 = vmatprep.subr.mxu0 0.0
    %2120 = vmatpush1.msra.mxu0 %v2104
    %2121 = vmatprep.subr.mxu0 0.0
    %2122 = vmatpush1.msra.mxu0 %v2103
    %2123 = vmatprep.subr.mxu0 0.0
    %2124 = vmatpush1.msra.mxu0 %v2102
    %2125 = vmatprep.subr.mxu0 0.0
    %2126 = vmatpush1.msra.mxu0 %v2101
    %2127 = vmatprep.subr.mxu0 0.0
    %2128 = vmatpush1.msra.mxu0 %v2100
    %2129 = vmatprep.subr.mxu0 0.0
    %2130 = vmatpush1.msra.mxu0 %v2099
    %2131 = vmatprep.subr.mxu0 0.0
    %2132 = vmatpush1.msra.mxu0 %v2098
    %2133 = vmatprep.subr.mxu0 0.0
    %2134 = vmatpush1.msra.mxu0 %v2097
    %2135 = vmatprep.subr.mxu0 0.0
    %2136 = vmatpush1.msra.mxu0 %v2096
    %2137 = vmatprep.subr.mxu0 0.0
    %2138 = vmatpush1.msra.mxu0 %v2095
    %2139 = vmatprep.subr.mxu0 0.0
    %2140 = vmatpush1.msra.mxu0 %v2094
    %2141 = vmatprep.subr.mxu0 0.0
    %2142 = vmatpush1.msra.mxu0 %v2093
    %2143 = vmatprep.subr.mxu0 0.0
    %2144 = vmatpush1.msra.mxu0 %v2092
    %2145 = vmatprep.subr.mxu0 0.0
    %2146 = vmatpush2.msra.mxu0 0.0
    %2147 = vmatprep.subr.mxu0 0.0
    %2148 = vmatpush2.msra.mxu0 0.0
    %2149 = vmatprep.subr.mxu0 0.0
    %2150 = vmatpush2.msra.mxu0 0.0
    %2151 = vmatprep.subr.mxu0 0.0
    %2152 = vmatpush2.msra.mxu0 0.0
    %2153 = vmatprep.subr.mxu0 0.0
    %2154 = vmatpush2.msra.mxu0 0.0
    %2155 = vmatprep.subr.mxu0 0.0
    %2156 = vmatpush2.msra.mxu0 0.0
    %2157 = vmatprep.subr.mxu0 0.0
    %2158 = vmatpush2.msra.mxu0 0.0
    %2159 = vmatprep.subr.mxu0 0.0
    %2160 = vmatpush2.msra.mxu0 0.0
    %2161 = vmatprep.subr.mxu0 0.0
    %2162 = vmatpush2.msra.mxu0 0.0
    %2163 = vmatprep.subr.mxu0 0.0
    %2164 = vmatpush2.msra.mxu0 0.0
    %2165 = vmatprep.subr.mxu0 0.0
    %2166 = vmatpush2.msra.mxu0 0.0
    %2167 = vmatprep.subr.mxu0 0.0
    %2168 = vmatpush2.msra.mxu0 0.0
    %2169 = vmatprep.subr.mxu0 0.0
    %2170 = vmatpush2.msra.mxu0 0.0
    %2171 = vmatprep.subr.mxu0 0.0
    %2172 = vmatpush2.msra.mxu0 0.0
    %2173 = vmatprep.subr.mxu0 0.0
    %2174 = vmatpush2.msra.mxu0 0.0
    %2175 = vmatprep.subr.mxu0 0.0
    %2176 = vmatpush2.msra.mxu0 0.0
    %2177 = vmatprep.mubr.f32.mxu0 0.0
    %2178 = vmatmul.mubr.f32.gmra.mxu0 %v2088
    %v2179 = vpop.f32.mrf.mxu0
    %v2180 = vadd.f32 %v2112, %v2179
    %v2181 = vpop.f32.mrf.mxu0
    %2182 = vmatprep.mubr.f32.mxu0 0.0
    %2183 = vmatmul.mubr.f32.gmra.mxu0 %v2089
    %v2184 = vpop.f32.mrf.mxu0
    %v2185 = vadd.f32 %v2112, %v2184
    %v2186 = vpop.f32.mrf.mxu0
    %2187 = vmatprep.mubr.f32.mxu0 0.0
    %2188 = vmatmul.mubr.f32.gmra.mxu0 %v2090
    %v2189 = vpop.f32.mrf.mxu0
    %v2190 = vadd.f32 %v2112, %v2189
    %v2191 = vpop.f32.mrf.mxu0
    %2192 = vmatprep.mubr.f32.mxu0 0.0
    %2193 = vmatmul.mubr.f32.gmra.mxu0 %v2091
    %v2194 = vpop.f32.mrf.mxu0
    %v2195 = vadd.f32 %v2112, %v2194
    %v2196 = vpop.f32.mrf.mxu0
    %2197 = vdwg.mxu0
    %v2198 = vadd.f32 %v1978, %v2180
    %v2199 = vadd.f32 %v1979, %v2185
    %v2200 = vadd.f32 %v1980, %v2190
    %v2201 = vadd.f32 %v1981, %v2195
    %v2202 = vld [vmem:[%s2 + $0x98] sm:$0x1]
    %v2203 = vld [vmem:[%s2 + $0xa0] sm:$0x1]
    %v2204 = vsel %vm150, %v2198, 0.0
    %2205 = vadd.xlane.f32.xlu0 %v2204
    %v2206 = vpop.xlane.xlu0 %2205
    %v2207 = vsel %vm150, %v2199, 0.0
    %2208 = vadd.xlane.f32.xlu0 %v2207
    %v2209 = vpop.xlane.xlu0 %2208
    %v2210 = vsel %vm150, %v2200, 0.0
    %2211 = vadd.xlane.f32.xlu0 %v2210
    %v2212 = vpop.xlane.xlu0 %2211
    %v2213 = vsel %vm150, %v2201, 0.0
    %2214 = vadd.xlane.f32.xlu0 %v2213
    %v2215 = vpop.xlane.xlu0 %2214
    %v2216 = vmul.f32 %v2206, %v861
    %v2217 = vmul.f32 %v2209, %v861
    %v2218 = vmul.f32 %v2212, %v861
    %v2219 = vmul.f32 %v2215, %v861
    %v2220 = vsub.f32 %v2198, %v2216
    %v2221 = vsub.f32 %v2199, %v2217
    %v2222 = vsub.f32 %v2200, %v2218
    %v2223 = vsub.f32 %v2201, %v2219
    %v2224 = vmul.f32 %v2220, %v2220
    %v2225 = vmul.f32 %v2221, %v2221
    %v2226 = vmul.f32 %v2222, %v2222
    %v2227 = vmul.f32 %v2223, %v2223
    %v2228 = vsel %vm150, %v2224, 0.0
    %2229 = vadd.xlane.f32.xlu0 %v2228
    %v2230 = vpop.xlane.xlu0 %2229
    %v2231 = vsel %vm150, %v2225, 0.0
    %2232 = vadd.xlane.f32.xlu0 %v2231
    %v2233 = vpop.xlane.xlu0 %2232
    %v2234 = vsel %vm150, %v2226, 0.0
    %2235 = vadd.xlane.f32.xlu0 %v2234
    %v2236 = vpop.xlane.xlu0 %2235
    %v2237 = vsel %vm150, %v2227, 0.0
    %2238 = vadd.xlane.f32.xlu0 %v2237
    %v2239 = vpop.xlane.xlu0 %2238
    %v2240 = vmul.f32 %v2230, %v861
    %v2241 = vmul.f32 %v2233, %v861
    %v2242 = vmul.f32 %v2236, %v861
    %v2243 = vmul.f32 %v2239, %v861
    %v2244 = vadd.f32 %v2240, 1e-05
    %v2245 = vadd.f32 %v2241, 1e-05
    %v2246 = vadd.f32 %v2242, 1e-05
    %v2247 = vadd.f32 %v2243, 1e-05
    %v2248 = vrsqrt.pop %v2244
    %v2249 = vrsqrt.pop %v2245
    %v2250 = vrsqrt.pop %v2246
    %v2251 = vrsqrt.pop %v2247
    %v2252 = vmul.f32 %v2220, %v2248
    %v2253 = vmul.f32 %v2221, %v2249
    %v2254 = vmul.f32 %v2222, %v2250
    %v2255 = vmul.f32 %v2223, %v2251
    %v2256 = vlaneseq
    %v2257 = vshrl.u32 %v2256, 7
    %v2258 = vsub.s32 0, %v2257
    %v2259 = vrot.slane %v2202, %v2258
    %v2260 = vmul.f32 %v2252, %v2259
    %v2261 = vmul.f32 %v2253, %v2259
    %v2262 = vmul.f32 %v2254, %v2259
    %v2263 = vmul.f32 %v2255, %v2259
    %v2264 = vlaneseq
    %v2265 = vshrl.u32 %v2264, 7
    %v2266 = vsub.s32 0, %v2265
    %v2267 = vrot.slane %v2203, %v2266
    %v2268 = vadd.f32 %v2260, %v2267
    %v2269 = vadd.f32 %v2261, %v2267
    %v2270 = vadd.f32 %v2262, %v2267
    %v2271 = vadd.f32 %v2263, %v2267
    %2272 = vst.msk [vmem:[#allocation2] sm:$0xff] %vm150, %v2268
    %2273 = vst.msk [vmem:[#allocation2 + $0x8] sm:$0xff] %vm150, %v2269
    %2274 = vst.msk [vmem:[#allocation2 + $0x10] sm:$0xff] %vm150, %v2270
    %2275 = vst.msk [vmem:[#allocation2 + $0x18] sm:$0xff] %vm150, %v2271
    // Predicated region
    $region14: #{vit_forward_pallas.1} parent=1 // pred_check
      _
    $region15: #{vit_forward_pallas.1} parent=1 // pred_check_branch
      %2277 = sbr.rel (0) target = $region17
    $region16: #{vit_forward_pallas.1} parent=1 // pred_region
      %s2279 = ssub.s32 512, 512
      %2280 = vsyncadd [#allocation3], %s2279
      %s2281 = sshll.u32 [#allocation2], 4
      %s2282 = int_to_ptr.vmem [resolvable:$true] %s2281
      %2287 = dma.vmem_to_hbm [thread:$0]  %s2282, 512, %s3, [#allocation3], 128, 128, 8
    $region17: #{vit_forward_pallas.1} parent=1 // pred_fallthru
      _
    // Predicated region
    $region18: #{vit_forward_pallas.1} parent=1 // pred_check
      _
    $region19: #{vit_forward_pallas.1} parent=1 // pred_check_branch
      %2289 = sbr.rel (0) target = $region21
    $region20: #{vit_forward_pallas.1} parent=1 // pred_region
      %2290 = dma.done [#allocation3], 512
    $region21: #{vit_forward_pallas.1} parent=1 // pred_fallthru
      _
    %2291 = vsyncpa [#allocation3], 1

</llo_original>
